<compile_context>
chip_gen: v6e
topology: v6e:2x2x1
jax: 0.10.0
libtpu: 0.0.40
codegen_flags: <defaults>
</compile_context>

<pallas_src>
import hashlib

import jax
import jax.numpy as jnp
from jax.experimental import pallas as pl
from jax.experimental.pallas import tpu as pltpu

NUM_BUCKETS = 100
EMBEDDING_DIM = 16


# TODO(synk): MD5/SHA1 string hashing has no Pallas/TPU equivalent; it is done
# on the host exactly as in the PyTorch module (hash of str(feature) mod buckets).
def hash_function_1(f, num_buckets=NUM_BUCKETS):
    return int(hashlib.md5(str(f).encode()).hexdigest(), 16) % num_buckets


def hash_function_2(f, num_buckets=NUM_BUCKETS):
    return int(hashlib.sha1(str(f).encode()).hexdigest(), 16) % num_buckets


def _round_up(x, m):
    return (x + m - 1) // m * m


def pad_table(table):
    """Pad the bucket axis to a 128 multiple (full-vreg compares, aligned MXU K).

    Done ONCE at init and reused across forward calls (hoisted out of the hot
    path so the table is not re-read/re-written in HBM every call). D is left
    unpadded: masked 16-lane output stores are cheaper than writing 8x padded
    bytes plus a slice pass.
    """
    nb, d = table.shape
    nbp = _round_up(nb, 128)
    return jnp.zeros((nbp, d), table.dtype).at[:nb, :].set(table)


def _double_hash_embed_kernel(h_ref, table_ref, out_ref):
    """out = (onehot(h1) + onehot(h2)) @ table  ==  E[h1] + E[h2].

    h_ref     : VMEM int32 [tb, 2]   hash pairs for this batch tile
    table_ref : VMEM f32   [NBp, D]  zero-padded table, resident across the grid
    out_ref   : VMEM f32   [tb, D]
    """
    tb = out_ref.shape[0]
    nbp = table_ref.shape[0]

    col = jax.lax.broadcasted_iota(jnp.int32, (tb, nbp), 1)
    h = h_ref[...]
    # Vectorized summed one-hot: one broadcast-compare per hash (O(tb*nbp) VPU
    # work total, independent of tb per (8,128) slab).
    onehot = ((col == h[:, 0:1]).astype(jnp.float32)
              + (col == h[:, 1:2]).astype(jnp.float32))

    # Single MXU matmul == exact gather-and-sum of the two embedding rows.
    # Precision.HIGHEST keeps f32 inputs exact (no bf16 demotion of the table).
    out_ref[...] = jnp.dot(
        onehot, table_ref[...],
        precision=jax.lax.Precision.HIGHEST,
        preferred_element_type=jnp.float32,
    ).astype(out_ref.dtype)


def _default_tb_max():
    # 256 matches the v6e/v7x 256-wide MXU M dimension; 128 is enough on v5e.
    try:
        kind = jax.devices()[0].device_kind.lower()
    except Exception:  # pragma: no cover
        kind = ""
    return 128 if "v5" in kind else 256


def _choose_tb(b, tb_max):
    """Largest batch tile up to tb_max, but keep >= 2 grid steps when the batch
    allows it so both v7x TensorCores get work via the 'parallel' grid axis."""
    tb = min(tb_max, _round_up(b, 8))
    if b >= 16 and tb >= b:
        tb = max(8, _round_up((b + 1) // 2, 8))
    return tb


def double_hashing_embedding(h1, h2, table_p, *, tb_max=None):
    """h1, h2: int [B]; table_p: f32 [NBp, D] (pre-padded via pad_table)
    -> f32 [B, D]  (aggregation='sum')."""
    b = int(h1.shape[0])
    nbp, d = table_p.shape

    # The one-hot MXU formulation does NBp*D MACs per sample and keeps the whole
    # padded table resident in VMEM -> only right for small bucket counts.
    # TODO(synk): for NB >~ 4K switch to a DMA row-gather (scalar-prefetched
    # indices / manual make_async_copy) so VMEM stays O(tb*D).
    assert nbp * d * 4 <= 16 * 1024 * 1024, "table too large for resident one-hot path"

    if tb_max is None:
        tb_max = _default_tb_max()
    tb = _choose_tb(b, tb_max)
    bp = _round_up(b, tb)

    # Hash pairs as one (bp, 2) int32 VMEM input (matches the vectorized compare;
    # no strided scatters). Padded rows select bucket 0 and are sliced off below.
    h_pairs = jnp.stack([h1.astype(jnp.int32), h2.astype(jnp.int32)], axis=1)
    if bp > b:
        h_pairs = jnp.pad(h_pairs, ((0, bp - b), (0, 0)))

    def call(table_pipeline_mode):
        if table_pipeline_mode is not None:
            table_spec = pl.BlockSpec((nbp, d), lambda i: (0, 0),
                                      pipeline_mode=table_pipeline_mode)
        else:
            table_spec = pl.BlockSpec((nbp, d), lambda i: (0, 0))
        return pl.pallas_call(
            _double_hash_embed_kernel,
            out_shape=jax.ShapeDtypeStruct((bp, d), table_p.dtype),
            grid=(bp // tb,),
            in_specs=[
                pl.BlockSpec((tb, 2), lambda i: (i, 0)),   # hash pairs, pipelined
                table_spec,                                # resident table
            ],
            out_specs=pl.BlockSpec((tb, d), lambda i: (i, 0)),
            compiler_params=pltpu.CompilerParams(
                dimension_semantics=("parallel",),
                vmem_limit_bytes=32 * 1024 * 1024,
            ),
        )(h_pairs, table_p)

    try:
        # Invariant table (block index never changes): single-buffer it so the
        # default 2-deep pipeline does not waste a second table-sized buffer.
        out_p = call(pl.Buffered(1))
    except Exception:
        # Fallback for jax versions that reject buffer_count=1.
        out_p = call(None)

    return out_p[:b] if bp > b else out_p


def make_embedding_table(key, num_buckets, embedding_dim):
    # nn.init.xavier_uniform_ on an [num_buckets, embedding_dim] weight:
    # bound = sqrt(6 / (fan_in + fan_out)).
    bound = (6.0 / (num_buckets + embedding_dim)) ** 0.5
    return jax.random.uniform(
        key, (num_buckets, embedding_dim), dtype=jnp.float32,
        minval=-bound, maxval=bound)


if __name__ == "__main__":
    key = jax.random.PRNGKey(0)
    k_table, k_feat = jax.random.split(key)

    batch = 16
    table = make_embedding_table(k_table, NUM_BUCKETS, EMBEDDING_DIM)
    table_p = pad_table(table)   # hoisted: pad once at init, reuse every forward

    # Synthetic integer feature IDs (what would be passed to forward()).
    features = jax.random.randint(k_feat, (batch,), 0, 10_000, dtype=jnp.int32)
    feat_list = [int(f) for f in features]

    # Host-side double hashing, identical semantics to the PyTorch module.
    h1 = jnp.array([hash_function_1(f) for f in feat_list], dtype=jnp.int32)
    h2 = jnp.array([hash_function_2(f) for f in feat_list], dtype=jnp.int32)

    out = double_hashing_embedding(h1, h2, table_p)
    out = jax.block_until_ready(out)

    # Reference check in plain JAX (exact gather; one-hot matmul is exact at HIGHEST).
    ref = table[h1] + table[h2]
    assert out.shape == (batch, EMBEDDING_DIM)
    assert jnp.allclose(out, ref, atol=1e-6), "mismatch vs reference gather"

    print("KERNEL_OK")
</pallas_src>

<mosaic_0001>
module attributes {stable_mosaic.version = 11 : i64} {
  func.func @_double_hash_embed_kernel(%arg0: i32, %arg1: memref<8x2xi32, #tpu.memory_space<vmem>>, %arg2: memref<128x16xf32, #tpu.memory_space<vmem>>, %arg3: memref<8x16xf32, #tpu.memory_space<vmem>>) attributes {dimension_semantics = [#tpu.dimension_semantics<parallel>], iteration_bounds = array<i64: 2>, scalar_prefetch = 0 : i64, scratch_operands = 0 : i64, tpu.core_type = #tpu.core_type<tc>, window_params = [{transform_indices = @transform_0, window_bounds = array<i64: 8, 2>}, {pipeline_mode = #tpu.pipeline_mode<synchronous>, transform_indices = @transform_1, window_bounds = array<i64: 128, 16>}, {transform_indices = @transform_2, window_bounds = array<i64: 8, 16>}]} {
    %0 = tpu.iota {dimensions = array<i32: 1>} : vector<8x128xi32>
    %c0 = arith.constant 0 : index
    %c0_0 = arith.constant 0 : index
    %1 = vector.load %arg1[%c0, %c0_0] : memref<8x2xi32, #tpu.memory_space<vmem>>, vector<8x2xi32>
    %2 = vector.extract_strided_slice %1 {offsets = [0, 0], sizes = [8, 1], strides = [1, 1]} : vector<8x2xi32> to vector<8x1xi32>
    %3 = vector.broadcast %2 : vector<8x1xi32> to vector<8x128xi32>
    %4 = arith.cmpi eq, %0, %3 : vector<8x128xi32>
    %5 = arith.extui %4 : vector<8x128xi1> to vector<8x128xi32>
    %6 = arith.sitofp %5 : vector<8x128xi32> to vector<8x128xf32>
    %7 = vector.extract_strided_slice %1 {offsets = [0, 1], sizes = [8, 1], strides = [1, 1]} : vector<8x2xi32> to vector<8x1xi32>
    %8 = vector.broadcast %7 : vector<8x1xi32> to vector<8x128xi32>
    %9 = arith.cmpi eq, %0, %8 : vector<8x128xi32>
    %10 = arith.extui %9 : vector<8x128xi1> to vector<8x128xi32>
    %11 = arith.sitofp %10 : vector<8x128xi32> to vector<8x128xf32>
    %12 = arith.addf %6, %11 : vector<8x128xf32>
    %c0_1 = arith.constant 0 : index
    %c0_2 = arith.constant 0 : index
    %13 = vector.load %arg2[%c0_1, %c0_2] : memref<128x16xf32, #tpu.memory_space<vmem>>, vector<128x16xf32>
    %cst = arith.constant dense<0.000000e+00> : vector<8x16xf32>
    %14 = tpu.matmul %12, %13, %cst {dimension_numbers = #tpu.dot_dimension_numbers<[1], [0], [0], [1], [0, 0, 1, 1], [], []>, precision = #tpu.contract_precision<fp32>} : vector<8x128xf32>, vector<128x16xf32>, vector<8x16xf32> -> vector<8x16xf32>
    %c0_3 = arith.constant 0 : index
    %c0_4 = arith.constant 0 : index
    %15 = vector.load %arg3[%c0_3, %c0_4] : memref<8x16xf32, #tpu.memory_space<vmem>>, vector<8x16xf32>
    tpu.vector_store %arg3[%c0_3, %c0_4], %14 {strides = array<i32>} : memref<8x16xf32, #tpu.memory_space<vmem>>, vector<8x16xf32>,
    return
  }
  func.func @transform_0(%arg0: i32) -> (i32, i32) {
    %c0_i32 = arith.constant 0 : i32
    %c0_i32_0 = arith.constant 0 : i32
    return %arg0, %c0_i32 : i32, i32
  }
  func.func @transform_1(%arg0: i32) -> (i32, i32) {
    %c0_i32 = arith.constant 0 : i32
    %c0_i32_0 = arith.constant 0 : i32
    %c0_i32_1 = arith.constant 0 : i32
    return %c0_i32, %c0_i32_0 : i32, i32
  }
  func.func @transform_2(%arg0: i32) -> (i32, i32) {
    %c0_i32 = arith.constant 0 : i32
    %c0_i32_0 = arith.constant 0 : i32
    return %arg0, %c0_i32 : i32, i32
  }
}

module attributes {stable_mosaic.version = 11 : i64} {
  func.func @_double_hash_embed_kernel(%arg0: i32, %arg1: memref<8x2xi32, #tpu.memory_space<vmem>>, %arg2: memref<128x16xf32, #tpu.memory_space<vmem>>, %arg3: memref<8x16xf32, #tpu.memory_space<vmem>>) attributes {dimension_semantics = [#tpu.dimension_semantics<parallel>], iteration_bounds = array<i64: 2>, scalar_prefetch = 0 : i64, scratch_operands = 0 : i64, tpu.core_type = #tpu.core_type<tc>, window_params = [{transform_indices = @transform_0, window_bounds = array<i64: 8, 2>}, {pipeline_mode = #tpu.pipeline_mode<synchronous>, transform_indices = @transform_1, window_bounds = array<i64: 128, 16>}, {transform_indices = @transform_2, window_bounds = array<i64: 8, 16>}]} {
    %0 = tpu.iota {dimensions = array<i32: 1>} : vector<8x128xi32>
    %c0 = arith.constant 0 : index
    %c0_0 = arith.constant 0 : index
    %1 = vector.load %arg1[%c0, %c0_0] : memref<8x2xi32, #tpu.memory_space<vmem>>, vector<8x2xi32>
    %2 = vector.extract_strided_slice %1 {offsets = [0, 0], sizes = [8, 1], strides = [1, 1]} : vector<8x2xi32> to vector<8x1xi32>
    %3 = vector.broadcast %2 : vector<8x1xi32> to vector<8x128xi32>
    %4 = arith.cmpi eq, %0, %3 : vector<8x128xi32>
    %5 = arith.extui %4 : vector<8x128xi1> to vector<8x128xi32>
    %6 = arith.sitofp %5 : vector<8x128xi32> to vector<8x128xf32>
    %7 = vector.extract_strided_slice %1 {offsets = [0, 1], sizes = [8, 1], strides = [1, 1]} : vector<8x2xi32> to vector<8x1xi32>
    %8 = vector.broadcast %7 : vector<8x1xi32> to vector<8x128xi32>
    %9 = arith.cmpi eq, %0, %8 : vector<8x128xi32>
    %10 = arith.extui %9 : vector<8x128xi1> to vector<8x128xi32>
    %11 = arith.sitofp %10 : vector<8x128xi32> to vector<8x128xf32>
    %12 = arith.addf %6, %11 : vector<8x128xf32>
    %c0_1 = arith.constant 0 : index
    %c0_2 = arith.constant 0 : index
    %13 = vector.load %arg2[%c0_1, %c0_2] : memref<128x16xf32, #tpu.memory_space<vmem>>, vector<128x16xf32>
    %cst = arith.constant dense<0.000000e+00> : vector<8x16xf32>
    %14 = tpu.matmul %12, %13, %cst {dimension_numbers = #tpu.dot_dimension_numbers<[1], [0], [0], [1], [0, 0, 1, 1], [], []>, precision = #tpu.contract_precision<fp32>} : vector<8x128xf32>, vector<128x16xf32>, vector<8x16xf32> -> vector<8x16xf32>
    %c0_3 = arith.constant 0 : index
    %c0_4 = arith.constant 0 : index
    %15 = vector.load %arg3[%c0_3, %c0_4] : memref<8x16xf32, #tpu.memory_space<vmem>>, vector<8x16xf32>
    tpu.vector_store %arg3[%c0_3, %c0_4], %14 {strides = array<i32>} : memref<8x16xf32, #tpu.memory_space<vmem>>, vector<8x16xf32>,
    return
  }
  func.func @transform_0(%arg0: i32) -> (i32, i32) {
    %c0_i32 = arith.constant 0 : i32
    %c0_i32_0 = arith.constant 0 : i32
    return %arg0, %c0_i32 : i32, i32
  }
  func.func @transform_1(%arg0: i32) -> (i32, i32) {
    %c0_i32 = arith.constant 0 : i32
    %c0_i32_0 = arith.constant 0 : i32
    %c0_i32_1 = arith.constant 0 : i32
    return %c0_i32, %c0_i32_0 : i32, i32
  }
  func.func @transform_2(%arg0: i32) -> (i32, i32) {
    %c0_i32 = arith.constant 0 : i32
    %c0_i32_0 = arith.constant 0 : i32
    return %arg0, %c0_i32 : i32, i32
  }
}

</mosaic_0001>

<llo_original>
// kernel: tpu_custom_call.1
$region0: #{tpu_custom_call.1}
  #allocation0 [shape = 'u32[]', space=smem, size = 0x4, offset = 0x4, fixed_abs, tag = 'smem constant byte address 0x4 - core index']
  #allocation1 [shape = 'u32[144,128]{1,0:T(1,128)}', space=vmem, size = 0x12000, scoped, tag = 'internal scratch']
  %s0 = inlined_call_operand.vmem [shape: s32[16,2], index: 0, kind: input, shape index: {}]
  %s1 = inlined_call_operand.vmem [shape: f32[128,16], index: 1, kind: input, shape index: {}]
  %s2 = inlined_call_operand.hbm [shape: f32[16,16], index: 2, kind: output, shape index: {}]
  %s3 = sld [smem:[#allocation0]]
  $region41: #{tpu_custom_call.1} parent=0
    _
  %s5 = ssub.s32 1, %s3
  %s6 = scalar_select 0, %s5, %s3
  $region1: #{tpu_custom_call.1} parent=0
    #allocation2 [shape = 'u8[8192]{0}', space=vmem, size = 0x2000, scoped, tag = 'output window, operand 0']
    #allocation3 [shape = 's32[2]{0}', space=sflag, size = 0x8, scoped, tag = 'scoped memory for tpu_custom_call.1']
    %7 = vsyncpa [#allocation3], 0
    %s8 = scalar_lea.sflag [#allocation3], 1
    %9 = vsyncpa %s8, 0
    loop: start=0, step=1, limit=4
    $region2: #{tpu_custom_call.1} parent=1 // loop_pre_header
      _
    $region3: #{tpu_custom_call.1} parent=1 // loop_header
      %s11 = sphi 0, %s15
      %p12 = scmp.ge.s32.totalorder %s11, 4
      %s21 = sphi 0, %s23
      %s24 = sphi 0, %s21
      %s25 = sphi 0, %s24
      %s41 = sphi 0, %s25
      %s45 = sphi 0, %s45
      %s47 = sphi 0, %s45
      %s48 = sphi 0, %s47
      %s62 = sphi 0, %s48
      %s68 = sphi 0, %s70
      %s71 = sphi 0, %s68
      %s72 = sphi 0, %s71
      %s88 = sphi 0, %s72
    $region4: #{tpu_custom_call.1} parent=1 // loop_header_branch
      %14 = sbr.rel (%p12) target = $region8
    $region5: #{tpu_custom_call.1} parent=1 // loop_body
      %s16 = ssub.s32 %s11, 1
      %s17 = ssub.s32 %s11, 2
      %s18 = sadd.s32 %s11, 1
      %s19 = ssub.s32 %s11, %s18
      %p20 = scmp.eq.s32.totalorder %s19, 0
      %s22 = sadd.s32 %s21, 1
      %s23 = scalar_select %p20, %s21, %s22
      %p26 = pneg %p20
      %p27 = scmp.eq.s32.totalorder %s11, 1
      %p28 = por %p26, %p27
      %p29 = scmp.ne.s32.totalorder %s21, %s24
      %p30 = scmp.eq.s32.totalorder %s11, 0
      %p31 = por %p29, %p30
      %p32 = scmp.ne.s32.totalorder %s21, %s24
      %p33 = scmp.eq.s32.totalorder %s16, 1
      %p34 = por %p32, %p33
      %p35 = scmp.ne.s32.totalorder %s24, %s25
      %p36 = scmp.eq.s32.totalorder %s16, 0
      %p37 = por %p35, %p36
      %p38 = scmp.ne.s32.totalorder %s24, %s25
      %p39 = scmp.eq.s32.totalorder %s17, 1
      %p40 = por %p38, %p39
      %p42 = scmp.ne.s32.totalorder %s25, %s41
      %p43 = scmp.eq.s32.totalorder %s17, 0
      %p44 = por %p42, %p43
      %s46 = sadd.s32 %s45, 1
      %p49 = scmp.eq.s32.totalorder %s11, 1
      %p50 = scmp.ne.s32.totalorder %s45, %s47
      %p51 = scmp.eq.s32.totalorder %s11, 0
      %p52 = por %p50, %p51
      %p53 = scmp.ne.s32.totalorder %s45, %s47
      %p54 = scmp.eq.s32.totalorder %s16, 1
      %p55 = por %p53, %p54
      %p56 = scmp.ne.s32.totalorder %s47, %s48
      %p57 = scmp.eq.s32.totalorder %s16, 0
      %p58 = por %p56, %p57
      %p59 = scmp.ne.s32.totalorder %s47, %s48
      %p60 = scmp.eq.s32.totalorder %s17, 1
      %p61 = por %p59, %p60
      %p63 = scmp.ne.s32.totalorder %s48, %s62
      %p64 = scmp.eq.s32.totalorder %s17, 0
      %p65 = por %p63, %p64
      %s66 = ssub.s32 %s11, %s18
      %p67 = scmp.eq.s32.totalorder %s66, 0
      %s69 = sadd.s32 %s68, 1
      %s70 = scalar_select %p67, %s68, %s69
      %p73 = pneg %p67
      %p74 = scmp.eq.s32.totalorder %s11, 1
      %p75 = por %p73, %p74
      %p76 = scmp.ne.s32.totalorder %s68, %s71
      %p77 = scmp.eq.s32.totalorder %s11, 0
      %p78 = por %p76, %p77
      %p79 = scmp.ne.s32.totalorder %s68, %s71
      %p80 = scmp.eq.s32.totalorder %s16, 1
      %p81 = por %p79, %p80
      %p82 = scmp.ne.s32.totalorder %s71, %s72
      %p83 = scmp.eq.s32.totalorder %s16, 0
      %p84 = por %p82, %p83
      %p85 = scmp.ne.s32.totalorder %s71, %s72
      %p86 = scmp.eq.s32.totalorder %s17, 1
      %p87 = por %p85, %p86
      %p89 = scmp.ne.s32.totalorder %s72, %s88
      %p90 = scmp.eq.s32.totalorder %s17, 0
      %p91 = por %p89, %p90
      %p92 = scmp.le.s32.totalorder 1, %s11
      %p93 = scmp.lt.s32.totalorder %s11, 3
      %p94 = pnand %p92, %p93
      %p95 = pneg %p94
      // Predicated region
      $region9: #{tpu_custom_call.1} parent=5 // pred_check
        _
      $region10: #{tpu_custom_call.1} parent=5 // pred_check_branch
        %97 = sbr.rel (%p94) target = $region12
      $region11: #{tpu_custom_call.1} parent=5 // pred_region
        %s98 = ssub.s32 %s11, 1
        // Predicated region
        $region13: #{tpu_custom_call.1} parent=11 // pred_check
          %p99 = pneg %p58
        $region14: #{tpu_custom_call.1} parent=11 // pred_check_branch
          %101 = sbr.rel (%p99) target = $region16
        $region15: #{tpu_custom_call.1} parent=11 // pred_region
          _
        $region16: #{tpu_custom_call.1} parent=11 // pred_fallthru
          _
      $region12: #{tpu_custom_call.1} parent=5 // pred_fallthru
        _
      %p102 = scmp.lt.s32.totalorder %s11, 2
      // Predicated region
      $region17: #{tpu_custom_call.1} parent=5 // pred_check
        %p103 = pneg %p102
      $region18: #{tpu_custom_call.1} parent=5 // pred_check_branch
        %105 = sbr.rel (%p103) target = $region20
      $region19: #{tpu_custom_call.1} parent=5 // pred_region
        // Predicated region
        $region21: #{tpu_custom_call.1} parent=19 // pred_check
          %p106 = pneg %p31
        $region22: #{tpu_custom_call.1} parent=19 // pred_check_branch
          %108 = sbr.rel (%p106) target = $region24
        $region23: #{tpu_custom_call.1} parent=19 // pred_region
          %p109 = scmp.lt.s32.totalorder %s11, 1
          %s110 = scalar_select %p109, %s11, 1
          %s111 = smul.addr %s110, 8
          %s112 = scalar_lea.vmem %s0, %s111
        $region24: #{tpu_custom_call.1} parent=19 // pred_fallthru
          _
      $region20: #{tpu_custom_call.1} parent=5 // pred_fallthru
        _
      %p113 = scmp.le.s32.totalorder 1, %s11
      %p114 = scmp.lt.s32.totalorder %s11, 3
      %p115 = pnand %p113, %p114
      %p116 = pneg %p115
      // Predicated region
      $region25: #{tpu_custom_call.1} parent=5 // pred_check
        _
      $region26: #{tpu_custom_call.1} parent=5 // pred_check_branch
        %118 = sbr.rel (%p115) target = $region28
      $region27: #{tpu_custom_call.1} parent=5 // pred_region
        %s119 = ssub.s32 %s11, 1
        %p120 = scmp.lt.s32.totalorder %s16, 1
        %s121 = scalar_select %p120, %s16, 1
        %s122 = smul.addr %s121, 8
        %s123 = scalar_lea.vmem %s0, %s122
        %p124 = pneg %p37
        %p125 = pneg %p34
        %p126 = pneg %p58
        %p127 = pneg %p55
        %p128 = pneg %p84
        %p129 = pneg %p81
        %s130 = sand.u32 %s71, 1
        %s131 = scalar_lea.sflag [#allocation3], %s130
        %s132 = sand.u32 %s71, 1
        %s133 = smul.addr %s132, 8
        %s134 = scalar_lea.vmem [#allocation2], %s133
        %p135 = scmp.lt.s32.totalorder %s16, 1
        %s136 = scalar_select %p135, %s16, 1
        %s137 = smul.addr %s136, 8
        %s138 = scalar_lea.vmem %s0, %s137
        %v139 = vlaneseq
        %v140 = vand.u32 %v139, 127
        %v141 = vld [vmem:[%s138] sm:$0xff]
        %142 = vset.pattern.permute.xlu0 0
        %143 = vperm.xlu0 %142, %v141
        %v144 = vpop.permute.xlu0 %143
        %vm145 = vcmp.eq.s32.totalorder %v140, %v144
        %v146 = vsel %vm145, 1, 0
        %v147 = vcvt.s32.f32 %v146
        %148 = vset.pattern.permute.xlu0 1
        %149 = vperm.xlu0 %148, %v141
        %v150 = vpop.permute.xlu0 %149
        %vm151 = vcmp.eq.s32.totalorder %v140, %v150
        %v152 = vsel %vm151, 1, 0
        %v153 = vcvt.s32.f32 %v152
        %v154 = vadd.f32 %v147, %v153
        %v155 = vld [vmem:[%s1] sm:$0xff]
        %v156 = vld [vmem:[%s1 + $0x8] sm:$0xff]
        %v157 = vld [vmem:[%s1 + $0x10] sm:$0xff]
        %v158 = vld [vmem:[%s1 + $0x18] sm:$0xff]
        %v159 = vld [vmem:[%s1 + $0x20] sm:$0xff]
        %v160 = vld [vmem:[%s1 + $0x28] sm:$0xff]
        %v161 = vld [vmem:[%s1 + $0x30] sm:$0xff]
        %v162 = vld [vmem:[%s1 + $0x38] sm:$0xff]
        %v163 = vld [vmem:[%s1 + $0x40] sm:$0xff]
        %v164 = vld [vmem:[%s1 + $0x48] sm:$0xff]
        %v165 = vld [vmem:[%s1 + $0x50] sm:$0xff]
        %v166 = vld [vmem:[%s1 + $0x58] sm:$0xff]
        %v167 = vld [vmem:[%s1 + $0x60] sm:$0xff]
        %v168 = vld [vmem:[%s1 + $0x68] sm:$0xff]
        %v169 = vld [vmem:[%s1 + $0x70] sm:$0xff]
        %v170 = vld [vmem:[%s1 + $0x78] sm:$0xff]
        %171 = vmatprep.subr.mxu0 0.0
        %v172 = vand.u32 %v170, 4294901760
        %173 = vmatpush1.msra.mxu0 %v172
        %174 = vmatprep.subr.mxu0 0.0
        %v175 = vand.u32 %v169, 4294901760
        %176 = vmatpush1.msra.mxu0 %v175
        %177 = vmatprep.subr.mxu0 0.0
        %v178 = vand.u32 %v168, 4294901760
        %179 = vmatpush1.msra.mxu0 %v178
        %180 = vmatprep.subr.mxu0 0.0
        %v181 = vand.u32 %v167, 4294901760
        %182 = vmatpush1.msra.mxu0 %v181
        %183 = vmatprep.subr.mxu0 0.0
        %v184 = vand.u32 %v166, 4294901760
        %185 = vmatpush1.msra.mxu0 %v184
        %186 = vmatprep.subr.mxu0 0.0
        %v187 = vand.u32 %v165, 4294901760
        %188 = vmatpush1.msra.mxu0 %v187
        %189 = vmatprep.subr.mxu0 0.0
        %v190 = vand.u32 %v164, 4294901760
        %191 = vmatpush1.msra.mxu0 %v190
        %192 = vmatprep.subr.mxu0 0.0
        %v193 = vand.u32 %v163, 4294901760
        %194 = vmatpush1.msra.mxu0 %v193
        %195 = vmatprep.subr.mxu0 0.0
        %v196 = vand.u32 %v162, 4294901760
        %197 = vmatpush1.msra.mxu0 %v196
        %198 = vmatprep.subr.mxu0 0.0
        %v199 = vand.u32 %v161, 4294901760
        %200 = vmatpush1.msra.mxu0 %v199
        %201 = vmatprep.subr.mxu0 0.0
        %v202 = vand.u32 %v160, 4294901760
        %203 = vmatpush1.msra.mxu0 %v202
        %204 = vmatprep.subr.mxu0 0.0
        %v205 = vand.u32 %v159, 4294901760
        %206 = vmatpush1.msra.mxu0 %v205
        %207 = vmatprep.subr.mxu0 0.0
        %v208 = vand.u32 %v158, 4294901760
        %209 = vmatpush1.msra.mxu0 %v208
        %210 = vmatprep.subr.mxu0 0.0
        %v211 = vand.u32 %v157, 4294901760
        %212 = vmatpush1.msra.mxu0 %v211
        %213 = vmatprep.subr.mxu0 0.0
        %v214 = vand.u32 %v156, 4294901760
        %215 = vmatpush1.msra.mxu0 %v214
        %216 = vmatprep.subr.mxu0 0.0
        %v217 = vand.u32 %v155, 4294901760
        %218 = vmatpush1.msra.mxu0 %v217
        %219 = vmatprep.subr.mxu0 0.0
        %220 = vmatpush2.msra.mxu0 0.0
        %221 = vmatprep.subr.mxu0 0.0
        %222 = vmatpush2.msra.mxu0 0.0
        %223 = vmatprep.subr.mxu0 0.0
        %224 = vmatpush2.msra.mxu0 0.0
        %225 = vmatprep.subr.mxu0 0.0
        %226 = vmatpush2.msra.mxu0 0.0
        %227 = vmatprep.subr.mxu0 0.0
        %228 = vmatpush2.msra.mxu0 0.0
        %229 = vmatprep.subr.mxu0 0.0
        %230 = vmatpush2.msra.mxu0 0.0
        %231 = vmatprep.subr.mxu0 0.0
        %232 = vmatpush2.msra.mxu0 0.0
        %233 = vmatprep.subr.mxu0 0.0
        %234 = vmatpush2.msra.mxu0 0.0
        %235 = vmatprep.subr.mxu0 0.0
        %236 = vmatpush2.msra.mxu0 0.0
        %237 = vmatprep.subr.mxu0 0.0
        %238 = vmatpush2.msra.mxu0 0.0
        %239 = vmatprep.subr.mxu0 0.0
        %240 = vmatpush2.msra.mxu0 0.0
        %241 = vmatprep.subr.mxu0 0.0
        %242 = vmatpush2.msra.mxu0 0.0
        %243 = vmatprep.subr.mxu0 0.0
        %244 = vmatpush2.msra.mxu0 0.0
        %245 = vmatprep.subr.mxu0 0.0
        %246 = vmatpush2.msra.mxu0 0.0
        %247 = vmatprep.subr.mxu0 0.0
        %248 = vmatpush2.msra.mxu0 0.0
        %249 = vmatprep.subr.mxu0 0.0
        %250 = vmatpush2.msra.mxu0 0.0
        %251 = vmatprep.mubr.f32.mxu0 0.0
        %v252 = vand.u32 %v154, 4294901760
        %v253 = vsub.f32 %v154, %v252
        %v254 = vand.u32 %v253, 4294901760
        %v255 = vsub.f32 %v253, %v254
        %v256 = vand.u32 %v255, 4294901760
        %257 = vmatmul.mubr.f32.gmra.mxu0 %v256
        %v258 = vpop.f32.mrf.mxu0
        %v259 = vadd.f32 0.0, %v258
        %v260 = vpop.f32.mrf.mxu0
        %261 = vdwg.mxu0
        %262 = vmatprep.subr.mxu0 0.0
        %v263 = vand.u32 %v170, 4294901760
        %v264 = vsub.f32 %v170, %v263
        %v265 = vand.u32 %v264, 4294901760
        %v266 = vsub.f32 %v264, %v265
        %v267 = vand.u32 %v266, 4294901760
        %268 = vmatpush1.msra.mxu0 %v267
        %269 = vmatprep.subr.mxu0 0.0
        %v270 = vand.u32 %v169, 4294901760
        %v271 = vsub.f32 %v169, %v270
        %v272 = vand.u32 %v271, 4294901760
        %v273 = vsub.f32 %v271, %v272
        %v274 = vand.u32 %v273, 4294901760
        %275 = vmatpush1.msra.mxu0 %v274
        %276 = vmatprep.subr.mxu0 0.0
        %v277 = vand.u32 %v168, 4294901760
        %v278 = vsub.f32 %v168, %v277
        %v279 = vand.u32 %v278, 4294901760
        %v280 = vsub.f32 %v278, %v279
        %v281 = vand.u32 %v280, 4294901760
        %282 = vmatpush1.msra.mxu0 %v281
        %283 = vmatprep.subr.mxu0 0.0
        %v284 = vand.u32 %v167, 4294901760
        %v285 = vsub.f32 %v167, %v284
        %v286 = vand.u32 %v285, 4294901760
        %v287 = vsub.f32 %v285, %v286
        %v288 = vand.u32 %v287, 4294901760
        %289 = vmatpush1.msra.mxu0 %v288
        %290 = vmatprep.subr.mxu0 0.0
        %v291 = vand.u32 %v166, 4294901760
        %v292 = vsub.f32 %v166, %v291
        %v293 = vand.u32 %v292, 4294901760
        %v294 = vsub.f32 %v292, %v293
        %v295 = vand.u32 %v294, 4294901760
        %296 = vmatpush1.msra.mxu0 %v295
        %297 = vmatprep.subr.mxu0 0.0
        %v298 = vand.u32 %v165, 4294901760
        %v299 = vsub.f32 %v165, %v298
        %v300 = vand.u32 %v299, 4294901760
        %v301 = vsub.f32 %v299, %v300
        %v302 = vand.u32 %v301, 4294901760
        %303 = vmatpush1.msra.mxu0 %v302
        %304 = vmatprep.subr.mxu0 0.0
        %v305 = vand.u32 %v164, 4294901760
        %v306 = vsub.f32 %v164, %v305
        %v307 = vand.u32 %v306, 4294901760
        %v308 = vsub.f32 %v306, %v307
        %v309 = vand.u32 %v308, 4294901760
        %310 = vmatpush1.msra.mxu0 %v309
        %311 = vmatprep.subr.mxu0 0.0
        %v312 = vand.u32 %v163, 4294901760
        %v313 = vsub.f32 %v163, %v312
        %v314 = vand.u32 %v313, 4294901760
        %v315 = vsub.f32 %v313, %v314
        %v316 = vand.u32 %v315, 4294901760
        %317 = vmatpush1.msra.mxu0 %v316
        %318 = vmatprep.subr.mxu0 0.0
        %v319 = vand.u32 %v162, 4294901760
        %v320 = vsub.f32 %v162, %v319
        %v321 = vand.u32 %v320, 4294901760
        %v322 = vsub.f32 %v320, %v321
        %v323 = vand.u32 %v322, 4294901760
        %324 = vmatpush1.msra.mxu0 %v323
        %325 = vmatprep.subr.mxu0 0.0
        %v326 = vand.u32 %v161, 4294901760
        %v327 = vsub.f32 %v161, %v326
        %v328 = vand.u32 %v327, 4294901760
        %v329 = vsub.f32 %v327, %v328
        %v330 = vand.u32 %v329, 4294901760
        %331 = vmatpush1.msra.mxu0 %v330
        %332 = vmatprep.subr.mxu0 0.0
        %v333 = vand.u32 %v160, 4294901760
        %v334 = vsub.f32 %v160, %v333
        %v335 = vand.u32 %v334, 4294901760
        %v336 = vsub.f32 %v334, %v335
        %v337 = vand.u32 %v336, 4294901760
        %338 = vmatpush1.msra.mxu0 %v337
        %339 = vmatprep.subr.mxu0 0.0
        %v340 = vand.u32 %v159, 4294901760
        %v341 = vsub.f32 %v159, %v340
        %v342 = vand.u32 %v341, 4294901760
        %v343 = vsub.f32 %v341, %v342
        %v344 = vand.u32 %v343, 4294901760
        %345 = vmatpush1.msra.mxu0 %v344
        %346 = vmatprep.subr.mxu0 0.0
        %v347 = vand.u32 %v158, 4294901760
        %v348 = vsub.f32 %v158, %v347
        %v349 = vand.u32 %v348, 4294901760
        %v350 = vsub.f32 %v348, %v349
        %v351 = vand.u32 %v350, 4294901760
        %352 = vmatpush1.msra.mxu0 %v351
        %353 = vmatprep.subr.mxu0 0.0
        %v354 = vand.u32 %v157, 4294901760
        %v355 = vsub.f32 %v157, %v354
        %v356 = vand.u32 %v355, 4294901760
        %v357 = vsub.f32 %v355, %v356
        %v358 = vand.u32 %v357, 4294901760
        %359 = vmatpush1.msra.mxu0 %v358
        %360 = vmatprep.subr.mxu0 0.0
        %v361 = vand.u32 %v156, 4294901760
        %v362 = vsub.f32 %v156, %v361
        %v363 = vand.u32 %v362, 4294901760
        %v364 = vsub.f32 %v362, %v363
        %v365 = vand.u32 %v364, 4294901760
        %366 = vmatpush1.msra.mxu0 %v365
        %367 = vmatprep.subr.mxu0 0.0
        %v368 = vand.u32 %v155, 4294901760
        %v369 = vsub.f32 %v155, %v368
        %v370 = vand.u32 %v369, 4294901760
        %v371 = vsub.f32 %v369, %v370
        %v372 = vand.u32 %v371, 4294901760
        %373 = vmatpush1.msra.mxu0 %v372
        %374 = vmatprep.subr.mxu0 0.0
        %375 = vmatpush2.msra.mxu0 0.0
        %376 = vmatprep.subr.mxu0 0.0
        %377 = vmatpush2.msra.mxu0 0.0
        %378 = vmatprep.subr.mxu0 0.0
        %379 = vmatpush2.msra.mxu0 0.0
        %380 = vmatprep.subr.mxu0 0.0
        %381 = vmatpush2.msra.mxu0 0.0
        %382 = vmatprep.subr.mxu0 0.0
        %383 = vmatpush2.msra.mxu0 0.0
        %384 = vmatprep.subr.mxu0 0.0
        %385 = vmatpush2.msra.mxu0 0.0
        %386 = vmatprep.subr.mxu0 0.0
        %387 = vmatpush2.msra.mxu0 0.0
        %388 = vmatprep.subr.mxu0 0.0
        %389 = vmatpush2.msra.mxu0 0.0
        %390 = vmatprep.subr.mxu0 0.0
        %391 = vmatpush2.msra.mxu0 0.0
        %392 = vmatprep.subr.mxu0 0.0
        %393 = vmatpush2.msra.mxu0 0.0
        %394 = vmatprep.subr.mxu0 0.0
        %395 = vmatpush2.msra.mxu0 0.0
        %396 = vmatprep.subr.mxu0 0.0
        %397 = vmatpush2.msra.mxu0 0.0
        %398 = vmatprep.subr.mxu0 0.0
        %399 = vmatpush2.msra.mxu0 0.0
        %400 = vmatprep.subr.mxu0 0.0
        %401 = vmatpush2.msra.mxu0 0.0
        %402 = vmatprep.subr.mxu0 0.0
        %403 = vmatpush2.msra.mxu0 0.0
        %404 = vmatprep.subr.mxu0 0.0
        %405 = vmatpush2.msra.mxu0 0.0
        %406 = vmatprep.mubr.f32.mxu0 0.0
        %v407 = vand.u32 %v154, 4294901760
        %408 = vmatmul.mubr.f32.gmra.mxu0 %v407
        %v409 = vpop.f32.mrf.mxu0
        %v410 = vadd.f32 %v259, %v409
        %v411 = vpop.f32.mrf.mxu0
        %412 = vdwg.mxu0
        %413 = vmatprep.subr.mxu0 0.0
        %v414 = vand.u32 %v170, 4294901760
        %v415 = vsub.f32 %v170, %v414
        %416 = vmatpush1.msra.mxu0 %v415
        %417 = vmatprep.subr.mxu0 0.0
        %v418 = vand.u32 %v169, 4294901760
        %v419 = vsub.f32 %v169, %v418
        %420 = vmatpush1.msra.mxu0 %v419
        %421 = vmatprep.subr.mxu0 0.0
        %v422 = vand.u32 %v168, 4294901760
        %v423 = vsub.f32 %v168, %v422
        %424 = vmatpush1.msra.mxu0 %v423
        %425 = vmatprep.subr.mxu0 0.0
        %v426 = vand.u32 %v167, 4294901760
        %v427 = vsub.f32 %v167, %v426
        %428 = vmatpush1.msra.mxu0 %v427
        %429 = vmatprep.subr.mxu0 0.0
        %v430 = vand.u32 %v166, 4294901760
        %v431 = vsub.f32 %v166, %v430
        %432 = vmatpush1.msra.mxu0 %v431
        %433 = vmatprep.subr.mxu0 0.0
        %v434 = vand.u32 %v165, 4294901760
        %v435 = vsub.f32 %v165, %v434
        %436 = vmatpush1.msra.mxu0 %v435
        %437 = vmatprep.subr.mxu0 0.0
        %v438 = vand.u32 %v164, 4294901760
        %v439 = vsub.f32 %v164, %v438
        %440 = vmatpush1.msra.mxu0 %v439
        %441 = vmatprep.subr.mxu0 0.0
        %v442 = vand.u32 %v163, 4294901760
        %v443 = vsub.f32 %v163, %v442
        %444 = vmatpush1.msra.mxu0 %v443
        %445 = vmatprep.subr.mxu0 0.0
        %v446 = vand.u32 %v162, 4294901760
        %v447 = vsub.f32 %v162, %v446
        %448 = vmatpush1.msra.mxu0 %v447
        %449 = vmatprep.subr.mxu0 0.0
        %v450 = vand.u32 %v161, 4294901760
        %v451 = vsub.f32 %v161, %v450
        %452 = vmatpush1.msra.mxu0 %v451
        %453 = vmatprep.subr.mxu0 0.0
        %v454 = vand.u32 %v160, 4294901760
        %v455 = vsub.f32 %v160, %v454
        %456 = vmatpush1.msra.mxu0 %v455
        %457 = vmatprep.subr.mxu0 0.0
        %v458 = vand.u32 %v159, 4294901760
        %v459 = vsub.f32 %v159, %v458
        %460 = vmatpush1.msra.mxu0 %v459
        %461 = vmatprep.subr.mxu0 0.0
        %v462 = vand.u32 %v158, 4294901760
        %v463 = vsub.f32 %v158, %v462
        %464 = vmatpush1.msra.mxu0 %v463
        %465 = vmatprep.subr.mxu0 0.0
        %v466 = vand.u32 %v157, 4294901760
        %v467 = vsub.f32 %v157, %v466
        %468 = vmatpush1.msra.mxu0 %v467
        %469 = vmatprep.subr.mxu0 0.0
        %v470 = vand.u32 %v156, 4294901760
        %v471 = vsub.f32 %v156, %v470
        %472 = vmatpush1.msra.mxu0 %v471
        %473 = vmatprep.subr.mxu0 0.0
        %v474 = vand.u32 %v155, 4294901760
        %v475 = vsub.f32 %v155, %v474
        %476 = vmatpush1.msra.mxu0 %v475
        %477 = vmatprep.subr.mxu0 0.0
        %478 = vmatpush2.msra.mxu0 0.0
        %479 = vmatprep.subr.mxu0 0.0
        %480 = vmatpush2.msra.mxu0 0.0
        %481 = vmatprep.subr.mxu0 0.0
        %482 = vmatpush2.msra.mxu0 0.0
        %483 = vmatprep.subr.mxu0 0.0
        %484 = vmatpush2.msra.mxu0 0.0
        %485 = vmatprep.subr.mxu0 0.0
        %486 = vmatpush2.msra.mxu0 0.0
        %487 = vmatprep.subr.mxu0 0.0
        %488 = vmatpush2.msra.mxu0 0.0
        %489 = vmatprep.subr.mxu0 0.0
        %490 = vmatpush2.msra.mxu0 0.0
        %491 = vmatprep.subr.mxu0 0.0
        %492 = vmatpush2.msra.mxu0 0.0
        %493 = vmatprep.subr.mxu0 0.0
        %494 = vmatpush2.msra.mxu0 0.0
        %495 = vmatprep.subr.mxu0 0.0
        %496 = vmatpush2.msra.mxu0 0.0
        %497 = vmatprep.subr.mxu0 0.0
        %498 = vmatpush2.msra.mxu0 0.0
        %499 = vmatprep.subr.mxu0 0.0
        %500 = vmatpush2.msra.mxu0 0.0
        %501 = vmatprep.subr.mxu0 0.0
        %502 = vmatpush2.msra.mxu0 0.0
        %503 = vmatprep.subr.mxu0 0.0
        %504 = vmatpush2.msra.mxu0 0.0
        %505 = vmatprep.subr.mxu0 0.0
        %506 = vmatpush2.msra.mxu0 0.0
        %507 = vmatprep.subr.mxu0 0.0
        %508 = vmatpush2.msra.mxu0 0.0
        %509 = vmatprep.mubr.f32.mxu0 0.0
        %v510 = vand.u32 %v154, 4294901760
        %v511 = vsub.f32 %v154, %v510
        %512 = vmatmul.mubr.f32.gmra.mxu0 %v511
        %v513 = vpop.f32.mrf.mxu0
        %v514 = vadd.f32 %v410, %v513
        %v515 = vpop.f32.mrf.mxu0
        %516 = vdwg.mxu0
        %517 = vmatprep.subr.mxu0 0.0
        %v518 = vand.u32 %v170, 4294901760
        %519 = vmatpush1.msra.mxu0 %v518
        %520 = vmatprep.subr.mxu0 0.0
        %v521 = vand.u32 %v169, 4294901760
        %522 = vmatpush1.msra.mxu0 %v521
        %523 = vmatprep.subr.mxu0 0.0
        %v524 = vand.u32 %v168, 4294901760
        %525 = vmatpush1.msra.mxu0 %v524
        %526 = vmatprep.subr.mxu0 0.0
        %v527 = vand.u32 %v167, 4294901760
        %528 = vmatpush1.msra.mxu0 %v527
        %529 = vmatprep.subr.mxu0 0.0
        %v530 = vand.u32 %v166, 4294901760
        %531 = vmatpush1.msra.mxu0 %v530
        %532 = vmatprep.subr.mxu0 0.0
        %v533 = vand.u32 %v165, 4294901760
        %534 = vmatpush1.msra.mxu0 %v533
        %535 = vmatprep.subr.mxu0 0.0
        %v536 = vand.u32 %v164, 4294901760
        %537 = vmatpush1.msra.mxu0 %v536
        %538 = vmatprep.subr.mxu0 0.0
        %v539 = vand.u32 %v163, 4294901760
        %540 = vmatpush1.msra.mxu0 %v539
        %541 = vmatprep.subr.mxu0 0.0
        %v542 = vand.u32 %v162, 4294901760
        %543 = vmatpush1.msra.mxu0 %v542
        %544 = vmatprep.subr.mxu0 0.0
        %v545 = vand.u32 %v161, 4294901760
        %546 = vmatpush1.msra.mxu0 %v545
        %547 = vmatprep.subr.mxu0 0.0
        %v548 = vand.u32 %v160, 4294901760
        %549 = vmatpush1.msra.mxu0 %v548
        %550 = vmatprep.subr.mxu0 0.0
        %v551 = vand.u32 %v159, 4294901760
        %552 = vmatpush1.msra.mxu0 %v551
        %553 = vmatprep.subr.mxu0 0.0
        %v554 = vand.u32 %v158, 4294901760
        %555 = vmatpush1.msra.mxu0 %v554
        %556 = vmatprep.subr.mxu0 0.0
        %v557 = vand.u32 %v157, 4294901760
        %558 = vmatpush1.msra.mxu0 %v557
        %559 = vmatprep.subr.mxu0 0.0
        %v560 = vand.u32 %v156, 4294901760
        %561 = vmatpush1.msra.mxu0 %v560
        %562 = vmatprep.subr.mxu0 0.0
        %v563 = vand.u32 %v155, 4294901760
        %564 = vmatpush1.msra.mxu0 %v563
        %565 = vmatprep.subr.mxu0 0.0
        %566 = vmatpush2.msra.mxu0 0.0
        %567 = vmatprep.subr.mxu0 0.0
        %568 = vmatpush2.msra.mxu0 0.0
        %569 = vmatprep.subr.mxu0 0.0
        %570 = vmatpush2.msra.mxu0 0.0
        %571 = vmatprep.subr.mxu0 0.0
        %572 = vmatpush2.msra.mxu0 0.0
        %573 = vmatprep.subr.mxu0 0.0
        %574 = vmatpush2.msra.mxu0 0.0
        %575 = vmatprep.subr.mxu0 0.0
        %576 = vmatpush2.msra.mxu0 0.0
        %577 = vmatprep.subr.mxu0 0.0
        %578 = vmatpush2.msra.mxu0 0.0
        %579 = vmatprep.subr.mxu0 0.0
        %580 = vmatpush2.msra.mxu0 0.0
        %581 = vmatprep.subr.mxu0 0.0
        %582 = vmatpush2.msra.mxu0 0.0
        %583 = vmatprep.subr.mxu0 0.0
        %584 = vmatpush2.msra.mxu0 0.0
        %585 = vmatprep.subr.mxu0 0.0
        %586 = vmatpush2.msra.mxu0 0.0
        %587 = vmatprep.subr.mxu0 0.0
        %588 = vmatpush2.msra.mxu0 0.0
        %589 = vmatprep.subr.mxu0 0.0
        %590 = vmatpush2.msra.mxu0 0.0
        %591 = vmatprep.subr.mxu0 0.0
        %592 = vmatpush2.msra.mxu0 0.0
        %593 = vmatprep.subr.mxu0 0.0
        %594 = vmatpush2.msra.mxu0 0.0
        %595 = vmatprep.subr.mxu0 0.0
        %596 = vmatpush2.msra.mxu0 0.0
        %597 = vmatprep.mubr.f32.mxu0 0.0
        %v598 = vand.u32 %v154, 4294901760
        %v599 = vsub.f32 %v154, %v598
        %v600 = vand.u32 %v599, 4294901760
        %601 = vmatmul.mubr.f32.gmra.mxu0 %v600
        %v602 = vpop.f32.mrf.mxu0
        %v603 = vadd.f32 %v514, %v602
        %v604 = vpop.f32.mrf.mxu0
        %605 = vdwg.mxu0
        %606 = vmatprep.subr.mxu0 0.0
        %v607 = vand.u32 %v170, 4294901760
        %v608 = vsub.f32 %v170, %v607
        %v609 = vand.u32 %v608, 4294901760
        %610 = vmatpush1.msra.mxu0 %v609
        %611 = vmatprep.subr.mxu0 0.0
        %v612 = vand.u32 %v169, 4294901760
        %v613 = vsub.f32 %v169, %v612
        %v614 = vand.u32 %v613, 4294901760
        %615 = vmatpush1.msra.mxu0 %v614
        %616 = vmatprep.subr.mxu0 0.0
        %v617 = vand.u32 %v168, 4294901760
        %v618 = vsub.f32 %v168, %v617
        %v619 = vand.u32 %v618, 4294901760
        %620 = vmatpush1.msra.mxu0 %v619
        %621 = vmatprep.subr.mxu0 0.0
        %v622 = vand.u32 %v167, 4294901760
        %v623 = vsub.f32 %v167, %v622
        %v624 = vand.u32 %v623, 4294901760
        %625 = vmatpush1.msra.mxu0 %v624
        %626 = vmatprep.subr.mxu0 0.0
        %v627 = vand.u32 %v166, 4294901760
        %v628 = vsub.f32 %v166, %v627
        %v629 = vand.u32 %v628, 4294901760
        %630 = vmatpush1.msra.mxu0 %v629
        %631 = vmatprep.subr.mxu0 0.0
        %v632 = vand.u32 %v165, 4294901760
        %v633 = vsub.f32 %v165, %v632
        %v634 = vand.u32 %v633, 4294901760
        %635 = vmatpush1.msra.mxu0 %v634
        %636 = vmatprep.subr.mxu0 0.0
        %v637 = vand.u32 %v164, 4294901760
        %v638 = vsub.f32 %v164, %v637
        %v639 = vand.u32 %v638, 4294901760
        %640 = vmatpush1.msra.mxu0 %v639
        %641 = vmatprep.subr.mxu0 0.0
        %v642 = vand.u32 %v163, 4294901760
        %v643 = vsub.f32 %v163, %v642
        %v644 = vand.u32 %v643, 4294901760
        %645 = vmatpush1.msra.mxu0 %v644
        %646 = vmatprep.subr.mxu0 0.0
        %v647 = vand.u32 %v162, 4294901760
        %v648 = vsub.f32 %v162, %v647
        %v649 = vand.u32 %v648, 4294901760
        %650 = vmatpush1.msra.mxu0 %v649
        %651 = vmatprep.subr.mxu0 0.0
        %v652 = vand.u32 %v161, 4294901760
        %v653 = vsub.f32 %v161, %v652
        %v654 = vand.u32 %v653, 4294901760
        %655 = vmatpush1.msra.mxu0 %v654
        %656 = vmatprep.subr.mxu0 0.0
        %v657 = vand.u32 %v160, 4294901760
        %v658 = vsub.f32 %v160, %v657
        %v659 = vand.u32 %v658, 4294901760
        %660 = vmatpush1.msra.mxu0 %v659
        %661 = vmatprep.subr.mxu0 0.0
        %v662 = vand.u32 %v159, 4294901760
        %v663 = vsub.f32 %v159, %v662
        %v664 = vand.u32 %v663, 4294901760
        %665 = vmatpush1.msra.mxu0 %v664
        %666 = vmatprep.subr.mxu0 0.0
        %v667 = vand.u32 %v158, 4294901760
        %v668 = vsub.f32 %v158, %v667
        %v669 = vand.u32 %v668, 4294901760
        %670 = vmatpush1.msra.mxu0 %v669
        %671 = vmatprep.subr.mxu0 0.0
        %v672 = vand.u32 %v157, 4294901760
        %v673 = vsub.f32 %v157, %v672
        %v674 = vand.u32 %v673, 4294901760
        %675 = vmatpush1.msra.mxu0 %v674
        %676 = vmatprep.subr.mxu0 0.0
        %v677 = vand.u32 %v156, 4294901760
        %v678 = vsub.f32 %v156, %v677
        %v679 = vand.u32 %v678, 4294901760
        %680 = vmatpush1.msra.mxu0 %v679
        %681 = vmatprep.subr.mxu0 0.0
        %v682 = vand.u32 %v155, 4294901760
        %v683 = vsub.f32 %v155, %v682
        %v684 = vand.u32 %v683, 4294901760
        %685 = vmatpush1.msra.mxu0 %v684
        %686 = vmatprep.subr.mxu0 0.0
        %687 = vmatpush2.msra.mxu0 0.0
        %688 = vmatprep.subr.mxu0 0.0
        %689 = vmatpush2.msra.mxu0 0.0
        %690 = vmatprep.subr.mxu0 0.0
        %691 = vmatpush2.msra.mxu0 0.0
        %692 = vmatprep.subr.mxu0 0.0
        %693 = vmatpush2.msra.mxu0 0.0
        %694 = vmatprep.subr.mxu0 0.0
        %695 = vmatpush2.msra.mxu0 0.0
        %696 = vmatprep.subr.mxu0 0.0
        %697 = vmatpush2.msra.mxu0 0.0
        %698 = vmatprep.subr.mxu0 0.0
        %699 = vmatpush2.msra.mxu0 0.0
        %700 = vmatprep.subr.mxu0 0.0
        %701 = vmatpush2.msra.mxu0 0.0
        %702 = vmatprep.subr.mxu0 0.0
        %703 = vmatpush2.msra.mxu0 0.0
        %704 = vmatprep.subr.mxu0 0.0
        %705 = vmatpush2.msra.mxu0 0.0
        %706 = vmatprep.subr.mxu0 0.0
        %707 = vmatpush2.msra.mxu0 0.0
        %708 = vmatprep.subr.mxu0 0.0
        %709 = vmatpush2.msra.mxu0 0.0
        %710 = vmatprep.subr.mxu0 0.0
        %711 = vmatpush2.msra.mxu0 0.0
        %712 = vmatprep.subr.mxu0 0.0
        %713 = vmatpush2.msra.mxu0 0.0
        %714 = vmatprep.subr.mxu0 0.0
        %715 = vmatpush2.msra.mxu0 0.0
        %716 = vmatprep.subr.mxu0 0.0
        %717 = vmatpush2.msra.mxu0 0.0
        %718 = vmatprep.mubr.f32.mxu0 0.0
        %v719 = vand.u32 %v154, 4294901760
        %720 = vmatmul.mubr.f32.gmra.mxu0 %v719
        %v721 = vpop.f32.mrf.mxu0
        %v722 = vadd.f32 %v603, %v721
        %v723 = vpop.f32.mrf.mxu0
        %724 = vdwg.mxu0
        %725 = vmatprep.subr.mxu0 0.0
        %v726 = vand.u32 %v170, 4294901760
        %727 = vmatpush1.msra.mxu0 %v726
        %728 = vmatprep.subr.mxu0 0.0
        %v729 = vand.u32 %v169, 4294901760
        %730 = vmatpush1.msra.mxu0 %v729
        %731 = vmatprep.subr.mxu0 0.0
        %v732 = vand.u32 %v168, 4294901760
        %733 = vmatpush1.msra.mxu0 %v732
        %734 = vmatprep.subr.mxu0 0.0
        %v735 = vand.u32 %v167, 4294901760
        %736 = vmatpush1.msra.mxu0 %v735
        %737 = vmatprep.subr.mxu0 0.0
        %v738 = vand.u32 %v166, 4294901760
        %739 = vmatpush1.msra.mxu0 %v738
        %740 = vmatprep.subr.mxu0 0.0
        %v741 = vand.u32 %v165, 4294901760
        %742 = vmatpush1.msra.mxu0 %v741
        %743 = vmatprep.subr.mxu0 0.0
        %v744 = vand.u32 %v164, 4294901760
        %745 = vmatpush1.msra.mxu0 %v744
        %746 = vmatprep.subr.mxu0 0.0
        %v747 = vand.u32 %v163, 4294901760
        %748 = vmatpush1.msra.mxu0 %v747
        %749 = vmatprep.subr.mxu0 0.0
        %v750 = vand.u32 %v162, 4294901760
        %751 = vmatpush1.msra.mxu0 %v750
        %752 = vmatprep.subr.mxu0 0.0
        %v753 = vand.u32 %v161, 4294901760
        %754 = vmatpush1.msra.mxu0 %v753
        %755 = vmatprep.subr.mxu0 0.0
        %v756 = vand.u32 %v160, 4294901760
        %757 = vmatpush1.msra.mxu0 %v756
        %758 = vmatprep.subr.mxu0 0.0
        %v759 = vand.u32 %v159, 4294901760
        %760 = vmatpush1.msra.mxu0 %v759
        %761 = vmatprep.subr.mxu0 0.0
        %v762 = vand.u32 %v158, 4294901760
        %763 = vmatpush1.msra.mxu0 %v762
        %764 = vmatprep.subr.mxu0 0.0
        %v765 = vand.u32 %v157, 4294901760
        %766 = vmatpush1.msra.mxu0 %v765
        %767 = vmatprep.subr.mxu0 0.0
        %v768 = vand.u32 %v156, 4294901760
        %769 = vmatpush1.msra.mxu0 %v768
        %770 = vmatprep.subr.mxu0 0.0
        %v771 = vand.u32 %v155, 4294901760
        %772 = vmatpush1.msra.mxu0 %v771
        %773 = vmatprep.subr.mxu0 0.0
        %774 = vmatpush2.msra.mxu0 0.0
        %775 = vmatprep.subr.mxu0 0.0
        %776 = vmatpush2.msra.mxu0 0.0
        %777 = vmatprep.subr.mxu0 0.0
        %778 = vmatpush2.msra.mxu0 0.0
        %779 = vmatprep.subr.mxu0 0.0
        %780 = vmatpush2.msra.mxu0 0.0
        %781 = vmatprep.subr.mxu0 0.0
        %782 = vmatpush2.msra.mxu0 0.0
        %783 = vmatprep.subr.mxu0 0.0
        %784 = vmatpush2.msra.mxu0 0.0
        %785 = vmatprep.subr.mxu0 0.0
        %786 = vmatpush2.msra.mxu0 0.0
        %787 = vmatprep.subr.mxu0 0.0
        %788 = vmatpush2.msra.mxu0 0.0
        %789 = vmatprep.subr.mxu0 0.0
        %790 = vmatpush2.msra.mxu0 0.0
        %791 = vmatprep.subr.mxu0 0.0
        %792 = vmatpush2.msra.mxu0 0.0
        %793 = vmatprep.subr.mxu0 0.0
        %794 = vmatpush2.msra.mxu0 0.0
        %795 = vmatprep.subr.mxu0 0.0
        %796 = vmatpush2.msra.mxu0 0.0
        %797 = vmatprep.subr.mxu0 0.0
        %798 = vmatpush2.msra.mxu0 0.0
        %799 = vmatprep.subr.mxu0 0.0
        %800 = vmatpush2.msra.mxu0 0.0
        %801 = vmatprep.subr.mxu0 0.0
        %802 = vmatpush2.msra.mxu0 0.0
        %803 = vmatprep.subr.mxu0 0.0
        %804 = vmatpush2.msra.mxu0 0.0
        %805 = vmatprep.mubr.f32.mxu0 0.0
        %v806 = vand.u32 %v154, 4294901760
        %807 = vmatmul.mubr.f32.gmra.mxu0 %v806
        %v808 = vpop.f32.mrf.mxu0
        %v809 = vadd.f32 %v722, %v808
        %v810 = vpop.f32.mrf.mxu0
        %811 = vdwg.mxu0
        %vm812 = vcmask 130048
        %813 = vst.msk [vmem:[%s134] sm:$0xff] %vm812, %v809
        %s814 = sand.u32 %s71, 1
        %s815 = scalar_lea.sflag [#allocation3], %s814
        %s816 = sand.u32 %s71, 1
        %s817 = smul.addr %s816, 8
        %s818 = scalar_lea.vmem [#allocation2], %s817
        // Predicated region
        $region29: #{tpu_custom_call.1} parent=27 // pred_check
          %p819 = pneg %p81
        $region30: #{tpu_custom_call.1} parent=27 // pred_check_branch
          %821 = sbr.rel (%p819) target = $region32
        $region31: #{tpu_custom_call.1} parent=27 // pred_region
          %s823 = ssub.s32 128, 128
          %824 = vsyncadd %s815, %s823
          %s825 = smul.addr %s16, 128
          %s826 = scalar_lea.hbm %s2, %s825
          %s828 = sshll.u32 %s818, 4
          %s829 = int_to_ptr.vmem [resolvable:$true] %s828
          %831 = dma.vmem_to_hbm [thread:$0]  %s829, 128, %s826, %s815
        $region32: #{tpu_custom_call.1} parent=27 // pred_fallthru
          _
      $region28: #{tpu_custom_call.1} parent=5 // pred_fallthru
        _
      %p832 = scmp.le.s32.totalorder 2, %s11
      // Predicated region
      $region33: #{tpu_custom_call.1} parent=5 // pred_check
        %p833 = pneg %p832
      $region34: #{tpu_custom_call.1} parent=5 // pred_check_branch
        %835 = sbr.rel (%p833) target = $region36
      $region35: #{tpu_custom_call.1} parent=5 // pred_region
        %s836 = ssub.s32 %s11, 2
        // Predicated region
        $region37: #{tpu_custom_call.1} parent=35 // pred_check
          %p837 = pneg %p87
        $region38: #{tpu_custom_call.1} parent=35 // pred_check_branch
          %839 = sbr.rel (%p837) target = $region40
        $region39: #{tpu_custom_call.1} parent=35 // pred_region
          %s840 = sand.u32 %s72, 1
          %s841 = scalar_lea.sflag [#allocation3], %s840
          %s842 = sand.u32 %s72, 1
          %s843 = smul.addr %s842, 8
          %s844 = scalar_lea.vmem [#allocation2], %s843
          %845 = dma.done %s841, 128
        $region40: #{tpu_custom_call.1} parent=35 // pred_fallthru
          _
      $region36: #{tpu_custom_call.1} parent=5 // pred_fallthru
        _
    $region6: #{tpu_custom_call.1} parent=1 // loop_footer
      %s15 = sadd.s32 1, %s11
    $region7: #{tpu_custom_call.1} parent=1 // loop_footer_branch
      %10 = sbr.rel target = $region3
    $region8: #{tpu_custom_call.1} parent=1 // loop_exit
      _
    %846 = vsyncpa [#allocation3], 1
    %s847 = scalar_lea.sflag [#allocation3], 1
    %848 = vsyncpa %s847, 1

// kernel: tpu_custom_call.1
$region0: #{tpu_custom_call.1}
  #allocation0 [shape = 'u32[]', space=smem, size = 0x4, offset = 0x4, fixed_abs, tag = 'smem constant byte address 0x4 - core index']
  #allocation1 [shape = 'u32[144,128]{1,0:T(1,128)}', space=vmem, size = 0x12000, scoped, tag = 'internal scratch']
  %s0 = inlined_call_operand.vmem [shape: s32[16,2], index: 0, kind: input, shape index: {}]
  %s1 = inlined_call_operand.vmem [shape: f32[128,16], index: 1, kind: input, shape index: {}]
  %s2 = inlined_call_operand.hbm [shape: f32[16,16], index: 2, kind: output, shape index: {}]
  %s3 = sld [smem:[#allocation0]]
  $region41: #{tpu_custom_call.1} parent=0
    _
  %s5 = ssub.s32 1, %s3
  %s6 = scalar_select 0, %s5, %s3
  $region1: #{tpu_custom_call.1} parent=0
    #allocation2 [shape = 'u8[8192]{0}', space=vmem, size = 0x2000, scoped, tag = 'output window, operand 0']
    #allocation3 [shape = 's32[2]{0}', space=sflag, size = 0x8, scoped, tag = 'scoped memory for tpu_custom_call.1']
    %7 = vsyncpa [#allocation3], 0
    %s8 = scalar_lea.sflag [#allocation3], 1
    %9 = vsyncpa %s8, 0
    loop: start=0, step=1, limit=4
    $region2: #{tpu_custom_call.1} parent=1 // loop_pre_header
      _
    $region3: #{tpu_custom_call.1} parent=1 // loop_header
      %s11 = sphi 0, %s15
      %p12 = scmp.ge.s32.totalorder %s11, 4
      %s21 = sphi 0, %s23
      %s24 = sphi 0, %s21
      %s25 = sphi 0, %s24
      %s41 = sphi 0, %s25
      %s45 = sphi 0, %s45
      %s47 = sphi 0, %s45
      %s48 = sphi 0, %s47
      %s62 = sphi 0, %s48
      %s68 = sphi 0, %s70
      %s71 = sphi 0, %s68
      %s72 = sphi 0, %s71
      %s88 = sphi 0, %s72
    $region4: #{tpu_custom_call.1} parent=1 // loop_header_branch
      %14 = sbr.rel (%p12) target = $region8
    $region5: #{tpu_custom_call.1} parent=1 // loop_body
      %s16 = ssub.s32 %s11, 1
      %s17 = ssub.s32 %s11, 2
      %s18 = sadd.s32 %s11, 1
      %s19 = ssub.s32 %s11, %s18
      %p20 = scmp.eq.s32.totalorder %s19, 0
      %s22 = sadd.s32 %s21, 1
      %s23 = scalar_select %p20, %s21, %s22
      %p26 = pneg %p20
      %p27 = scmp.eq.s32.totalorder %s11, 1
      %p28 = por %p26, %p27
      %p29 = scmp.ne.s32.totalorder %s21, %s24
      %p30 = scmp.eq.s32.totalorder %s11, 0
      %p31 = por %p29, %p30
      %p32 = scmp.ne.s32.totalorder %s21, %s24
      %p33 = scmp.eq.s32.totalorder %s16, 1
      %p34 = por %p32, %p33
      %p35 = scmp.ne.s32.totalorder %s24, %s25
      %p36 = scmp.eq.s32.totalorder %s16, 0
      %p37 = por %p35, %p36
      %p38 = scmp.ne.s32.totalorder %s24, %s25
      %p39 = scmp.eq.s32.totalorder %s17, 1
      %p40 = por %p38, %p39
      %p42 = scmp.ne.s32.totalorder %s25, %s41
      %p43 = scmp.eq.s32.totalorder %s17, 0
      %p44 = por %p42, %p43
      %s46 = sadd.s32 %s45, 1
      %p49 = scmp.eq.s32.totalorder %s11, 1
      %p50 = scmp.ne.s32.totalorder %s45, %s47
      %p51 = scmp.eq.s32.totalorder %s11, 0
      %p52 = por %p50, %p51
      %p53 = scmp.ne.s32.totalorder %s45, %s47
      %p54 = scmp.eq.s32.totalorder %s16, 1
      %p55 = por %p53, %p54
      %p56 = scmp.ne.s32.totalorder %s47, %s48
      %p57 = scmp.eq.s32.totalorder %s16, 0
      %p58 = por %p56, %p57
      %p59 = scmp.ne.s32.totalorder %s47, %s48
      %p60 = scmp.eq.s32.totalorder %s17, 1
      %p61 = por %p59, %p60
      %p63 = scmp.ne.s32.totalorder %s48, %s62
      %p64 = scmp.eq.s32.totalorder %s17, 0
      %p65 = por %p63, %p64
      %s66 = ssub.s32 %s11, %s18
      %p67 = scmp.eq.s32.totalorder %s66, 0
      %s69 = sadd.s32 %s68, 1
      %s70 = scalar_select %p67, %s68, %s69
      %p73 = pneg %p67
      %p74 = scmp.eq.s32.totalorder %s11, 1
      %p75 = por %p73, %p74
      %p76 = scmp.ne.s32.totalorder %s68, %s71
      %p77 = scmp.eq.s32.totalorder %s11, 0
      %p78 = por %p76, %p77
      %p79 = scmp.ne.s32.totalorder %s68, %s71
      %p80 = scmp.eq.s32.totalorder %s16, 1
      %p81 = por %p79, %p80
      %p82 = scmp.ne.s32.totalorder %s71, %s72
      %p83 = scmp.eq.s32.totalorder %s16, 0
      %p84 = por %p82, %p83
      %p85 = scmp.ne.s32.totalorder %s71, %s72
      %p86 = scmp.eq.s32.totalorder %s17, 1
      %p87 = por %p85, %p86
      %p89 = scmp.ne.s32.totalorder %s72, %s88
      %p90 = scmp.eq.s32.totalorder %s17, 0
      %p91 = por %p89, %p90
      %p92 = scmp.le.s32.totalorder 1, %s11
      %p93 = scmp.lt.s32.totalorder %s11, 3
      %p94 = pnand %p92, %p93
      %p95 = pneg %p94
      // Predicated region
      $region9: #{tpu_custom_call.1} parent=5 // pred_check
        _
      $region10: #{tpu_custom_call.1} parent=5 // pred_check_branch
        %97 = sbr.rel (%p94) target = $region12
      $region11: #{tpu_custom_call.1} parent=5 // pred_region
        %s98 = ssub.s32 %s11, 1
        // Predicated region
        $region13: #{tpu_custom_call.1} parent=11 // pred_check
          %p99 = pneg %p58
        $region14: #{tpu_custom_call.1} parent=11 // pred_check_branch
          %101 = sbr.rel (%p99) target = $region16
        $region15: #{tpu_custom_call.1} parent=11 // pred_region
          _
        $region16: #{tpu_custom_call.1} parent=11 // pred_fallthru
          _
      $region12: #{tpu_custom_call.1} parent=5 // pred_fallthru
        _
      %p102 = scmp.lt.s32.totalorder %s11, 2
      // Predicated region
      $region17: #{tpu_custom_call.1} parent=5 // pred_check
        %p103 = pneg %p102
      $region18: #{tpu_custom_call.1} parent=5 // pred_check_branch
        %105 = sbr.rel (%p103) target = $region20
      $region19: #{tpu_custom_call.1} parent=5 // pred_region
        // Predicated region
        $region21: #{tpu_custom_call.1} parent=19 // pred_check
          %p106 = pneg %p31
        $region22: #{tpu_custom_call.1} parent=19 // pred_check_branch
          %108 = sbr.rel (%p106) target = $region24
        $region23: #{tpu_custom_call.1} parent=19 // pred_region
          %p109 = scmp.lt.s32.totalorder %s11, 1
          %s110 = scalar_select %p109, %s11, 1
          %s111 = smul.addr %s110, 8
          %s112 = scalar_lea.vmem %s0, %s111
        $region24: #{tpu_custom_call.1} parent=19 // pred_fallthru
          _
      $region20: #{tpu_custom_call.1} parent=5 // pred_fallthru
        _
      %p113 = scmp.le.s32.totalorder 1, %s11
      %p114 = scmp.lt.s32.totalorder %s11, 3
      %p115 = pnand %p113, %p114
      %p116 = pneg %p115
      // Predicated region
      $region25: #{tpu_custom_call.1} parent=5 // pred_check
        _
      $region26: #{tpu_custom_call.1} parent=5 // pred_check_branch
        %118 = sbr.rel (%p115) target = $region28
      $region27: #{tpu_custom_call.1} parent=5 // pred_region
        %s119 = ssub.s32 %s11, 1
        %p120 = scmp.lt.s32.totalorder %s16, 1
        %s121 = scalar_select %p120, %s16, 1
        %s122 = smul.addr %s121, 8
        %s123 = scalar_lea.vmem %s0, %s122
        %p124 = pneg %p37
        %p125 = pneg %p34
        %p126 = pneg %p58
        %p127 = pneg %p55
        %p128 = pneg %p84
        %p129 = pneg %p81
        %s130 = sand.u32 %s71, 1
        %s131 = scalar_lea.sflag [#allocation3], %s130
        %s132 = sand.u32 %s71, 1
        %s133 = smul.addr %s132, 8
        %s134 = scalar_lea.vmem [#allocation2], %s133
        %p135 = scmp.lt.s32.totalorder %s16, 1
        %s136 = scalar_select %p135, %s16, 1
        %s137 = smul.addr %s136, 8
        %s138 = scalar_lea.vmem %s0, %s137
        %v139 = vlaneseq
        %v140 = vand.u32 %v139, 127
        %v141 = vld [vmem:[%s138] sm:$0xff]
        %142 = vset.pattern.permute.xlu0 0
        %143 = vperm.xlu0 %142, %v141
        %v144 = vpop.permute.xlu0 %143
        %vm145 = vcmp.eq.s32.totalorder %v140, %v144
        %v146 = vsel %vm145, 1, 0
        %v147 = vcvt.s32.f32 %v146
        %148 = vset.pattern.permute.xlu0 1
        %149 = vperm.xlu0 %148, %v141
        %v150 = vpop.permute.xlu0 %149
        %vm151 = vcmp.eq.s32.totalorder %v140, %v150
        %v152 = vsel %vm151, 1, 0
        %v153 = vcvt.s32.f32 %v152
        %v154 = vadd.f32 %v147, %v153
        %v155 = vld [vmem:[%s1] sm:$0xff]
        %v156 = vld [vmem:[%s1 + $0x8] sm:$0xff]
        %v157 = vld [vmem:[%s1 + $0x10] sm:$0xff]
        %v158 = vld [vmem:[%s1 + $0x18] sm:$0xff]
        %v159 = vld [vmem:[%s1 + $0x20] sm:$0xff]
        %v160 = vld [vmem:[%s1 + $0x28] sm:$0xff]
        %v161 = vld [vmem:[%s1 + $0x30] sm:$0xff]
        %v162 = vld [vmem:[%s1 + $0x38] sm:$0xff]
        %v163 = vld [vmem:[%s1 + $0x40] sm:$0xff]
        %v164 = vld [vmem:[%s1 + $0x48] sm:$0xff]
        %v165 = vld [vmem:[%s1 + $0x50] sm:$0xff]
        %v166 = vld [vmem:[%s1 + $0x58] sm:$0xff]
        %v167 = vld [vmem:[%s1 + $0x60] sm:$0xff]
        %v168 = vld [vmem:[%s1 + $0x68] sm:$0xff]
        %v169 = vld [vmem:[%s1 + $0x70] sm:$0xff]
        %v170 = vld [vmem:[%s1 + $0x78] sm:$0xff]
        %171 = vmatprep.subr.mxu0 0.0
        %v172 = vand.u32 %v170, 4294901760
        %173 = vmatpush1.msra.mxu0 %v172
        %174 = vmatprep.subr.mxu0 0.0
        %v175 = vand.u32 %v169, 4294901760
        %176 = vmatpush1.msra.mxu0 %v175
        %177 = vmatprep.subr.mxu0 0.0
        %v178 = vand.u32 %v168, 4294901760
        %179 = vmatpush1.msra.mxu0 %v178
        %180 = vmatprep.subr.mxu0 0.0
        %v181 = vand.u32 %v167, 4294901760
        %182 = vmatpush1.msra.mxu0 %v181
        %183 = vmatprep.subr.mxu0 0.0
        %v184 = vand.u32 %v166, 4294901760
        %185 = vmatpush1.msra.mxu0 %v184
        %186 = vmatprep.subr.mxu0 0.0
        %v187 = vand.u32 %v165, 4294901760
        %188 = vmatpush1.msra.mxu0 %v187
        %189 = vmatprep.subr.mxu0 0.0
        %v190 = vand.u32 %v164, 4294901760
        %191 = vmatpush1.msra.mxu0 %v190
        %192 = vmatprep.subr.mxu0 0.0
        %v193 = vand.u32 %v163, 4294901760
        %194 = vmatpush1.msra.mxu0 %v193
        %195 = vmatprep.subr.mxu0 0.0
        %v196 = vand.u32 %v162, 4294901760
        %197 = vmatpush1.msra.mxu0 %v196
        %198 = vmatprep.subr.mxu0 0.0
        %v199 = vand.u32 %v161, 4294901760
        %200 = vmatpush1.msra.mxu0 %v199
        %201 = vmatprep.subr.mxu0 0.0
        %v202 = vand.u32 %v160, 4294901760
        %203 = vmatpush1.msra.mxu0 %v202
        %204 = vmatprep.subr.mxu0 0.0
        %v205 = vand.u32 %v159, 4294901760
        %206 = vmatpush1.msra.mxu0 %v205
        %207 = vmatprep.subr.mxu0 0.0
        %v208 = vand.u32 %v158, 4294901760
        %209 = vmatpush1.msra.mxu0 %v208
        %210 = vmatprep.subr.mxu0 0.0
        %v211 = vand.u32 %v157, 4294901760
        %212 = vmatpush1.msra.mxu0 %v211
        %213 = vmatprep.subr.mxu0 0.0
        %v214 = vand.u32 %v156, 4294901760
        %215 = vmatpush1.msra.mxu0 %v214
        %216 = vmatprep.subr.mxu0 0.0
        %v217 = vand.u32 %v155, 4294901760
        %218 = vmatpush1.msra.mxu0 %v217
        %219 = vmatprep.subr.mxu0 0.0
        %220 = vmatpush2.msra.mxu0 0.0
        %221 = vmatprep.subr.mxu0 0.0
        %222 = vmatpush2.msra.mxu0 0.0
        %223 = vmatprep.subr.mxu0 0.0
        %224 = vmatpush2.msra.mxu0 0.0
        %225 = vmatprep.subr.mxu0 0.0
        %226 = vmatpush2.msra.mxu0 0.0
        %227 = vmatprep.subr.mxu0 0.0
        %228 = vmatpush2.msra.mxu0 0.0
        %229 = vmatprep.subr.mxu0 0.0
        %230 = vmatpush2.msra.mxu0 0.0
        %231 = vmatprep.subr.mxu0 0.0
        %232 = vmatpush2.msra.mxu0 0.0
        %233 = vmatprep.subr.mxu0 0.0
        %234 = vmatpush2.msra.mxu0 0.0
        %235 = vmatprep.subr.mxu0 0.0
        %236 = vmatpush2.msra.mxu0 0.0
        %237 = vmatprep.subr.mxu0 0.0
        %238 = vmatpush2.msra.mxu0 0.0
        %239 = vmatprep.subr.mxu0 0.0
        %240 = vmatpush2.msra.mxu0 0.0
        %241 = vmatprep.subr.mxu0 0.0
        %242 = vmatpush2.msra.mxu0 0.0
        %243 = vmatprep.subr.mxu0 0.0
        %244 = vmatpush2.msra.mxu0 0.0
        %245 = vmatprep.subr.mxu0 0.0
        %246 = vmatpush2.msra.mxu0 0.0
        %247 = vmatprep.subr.mxu0 0.0
        %248 = vmatpush2.msra.mxu0 0.0
        %249 = vmatprep.subr.mxu0 0.0
        %250 = vmatpush2.msra.mxu0 0.0
        %251 = vmatprep.mubr.f32.mxu0 0.0
        %v252 = vand.u32 %v154, 4294901760
        %v253 = vsub.f32 %v154, %v252
        %v254 = vand.u32 %v253, 4294901760
        %v255 = vsub.f32 %v253, %v254
        %v256 = vand.u32 %v255, 4294901760
        %257 = vmatmul.mubr.f32.gmra.mxu0 %v256
        %v258 = vpop.f32.mrf.mxu0
        %v259 = vadd.f32 0.0, %v258
        %v260 = vpop.f32.mrf.mxu0
        %261 = vdwg.mxu0
        %262 = vmatprep.subr.mxu0 0.0
        %v263 = vand.u32 %v170, 4294901760
        %v264 = vsub.f32 %v170, %v263
        %v265 = vand.u32 %v264, 4294901760
        %v266 = vsub.f32 %v264, %v265
        %v267 = vand.u32 %v266, 4294901760
        %268 = vmatpush1.msra.mxu0 %v267
        %269 = vmatprep.subr.mxu0 0.0
        %v270 = vand.u32 %v169, 4294901760
        %v271 = vsub.f32 %v169, %v270
        %v272 = vand.u32 %v271, 4294901760
        %v273 = vsub.f32 %v271, %v272
        %v274 = vand.u32 %v273, 4294901760
        %275 = vmatpush1.msra.mxu0 %v274
        %276 = vmatprep.subr.mxu0 0.0
        %v277 = vand.u32 %v168, 4294901760
        %v278 = vsub.f32 %v168, %v277
        %v279 = vand.u32 %v278, 4294901760
        %v280 = vsub.f32 %v278, %v279
        %v281 = vand.u32 %v280, 4294901760
        %282 = vmatpush1.msra.mxu0 %v281
        %283 = vmatprep.subr.mxu0 0.0
        %v284 = vand.u32 %v167, 4294901760
        %v285 = vsub.f32 %v167, %v284
        %v286 = vand.u32 %v285, 4294901760
        %v287 = vsub.f32 %v285, %v286
        %v288 = vand.u32 %v287, 4294901760
        %289 = vmatpush1.msra.mxu0 %v288
        %290 = vmatprep.subr.mxu0 0.0
        %v291 = vand.u32 %v166, 4294901760
        %v292 = vsub.f32 %v166, %v291
        %v293 = vand.u32 %v292, 4294901760
        %v294 = vsub.f32 %v292, %v293
        %v295 = vand.u32 %v294, 4294901760
        %296 = vmatpush1.msra.mxu0 %v295
        %297 = vmatprep.subr.mxu0 0.0
        %v298 = vand.u32 %v165, 4294901760
        %v299 = vsub.f32 %v165, %v298
        %v300 = vand.u32 %v299, 4294901760
        %v301 = vsub.f32 %v299, %v300
        %v302 = vand.u32 %v301, 4294901760
        %303 = vmatpush1.msra.mxu0 %v302
        %304 = vmatprep.subr.mxu0 0.0
        %v305 = vand.u32 %v164, 4294901760
        %v306 = vsub.f32 %v164, %v305
        %v307 = vand.u32 %v306, 4294901760
        %v308 = vsub.f32 %v306, %v307
        %v309 = vand.u32 %v308, 4294901760
        %310 = vmatpush1.msra.mxu0 %v309
        %311 = vmatprep.subr.mxu0 0.0
        %v312 = vand.u32 %v163, 4294901760
        %v313 = vsub.f32 %v163, %v312
        %v314 = vand.u32 %v313, 4294901760
        %v315 = vsub.f32 %v313, %v314
        %v316 = vand.u32 %v315, 4294901760
        %317 = vmatpush1.msra.mxu0 %v316
        %318 = vmatprep.subr.mxu0 0.0
        %v319 = vand.u32 %v162, 4294901760
        %v320 = vsub.f32 %v162, %v319
        %v321 = vand.u32 %v320, 4294901760
        %v322 = vsub.f32 %v320, %v321
        %v323 = vand.u32 %v322, 4294901760
        %324 = vmatpush1.msra.mxu0 %v323
        %325 = vmatprep.subr.mxu0 0.0
        %v326 = vand.u32 %v161, 4294901760
        %v327 = vsub.f32 %v161, %v326
        %v328 = vand.u32 %v327, 4294901760
        %v329 = vsub.f32 %v327, %v328
        %v330 = vand.u32 %v329, 4294901760
        %331 = vmatpush1.msra.mxu0 %v330
        %332 = vmatprep.subr.mxu0 0.0
        %v333 = vand.u32 %v160, 4294901760
        %v334 = vsub.f32 %v160, %v333
        %v335 = vand.u32 %v334, 4294901760
        %v336 = vsub.f32 %v334, %v335
        %v337 = vand.u32 %v336, 4294901760
        %338 = vmatpush1.msra.mxu0 %v337
        %339 = vmatprep.subr.mxu0 0.0
        %v340 = vand.u32 %v159, 4294901760
        %v341 = vsub.f32 %v159, %v340
        %v342 = vand.u32 %v341, 4294901760
        %v343 = vsub.f32 %v341, %v342
        %v344 = vand.u32 %v343, 4294901760
        %345 = vmatpush1.msra.mxu0 %v344
        %346 = vmatprep.subr.mxu0 0.0
        %v347 = vand.u32 %v158, 4294901760
        %v348 = vsub.f32 %v158, %v347
        %v349 = vand.u32 %v348, 4294901760
        %v350 = vsub.f32 %v348, %v349
        %v351 = vand.u32 %v350, 4294901760
        %352 = vmatpush1.msra.mxu0 %v351
        %353 = vmatprep.subr.mxu0 0.0
        %v354 = vand.u32 %v157, 4294901760
        %v355 = vsub.f32 %v157, %v354
        %v356 = vand.u32 %v355, 4294901760
        %v357 = vsub.f32 %v355, %v356
        %v358 = vand.u32 %v357, 4294901760
        %359 = vmatpush1.msra.mxu0 %v358
        %360 = vmatprep.subr.mxu0 0.0
        %v361 = vand.u32 %v156, 4294901760
        %v362 = vsub.f32 %v156, %v361
        %v363 = vand.u32 %v362, 4294901760
        %v364 = vsub.f32 %v362, %v363
        %v365 = vand.u32 %v364, 4294901760
        %366 = vmatpush1.msra.mxu0 %v365
        %367 = vmatprep.subr.mxu0 0.0
        %v368 = vand.u32 %v155, 4294901760
        %v369 = vsub.f32 %v155, %v368
        %v370 = vand.u32 %v369, 4294901760
        %v371 = vsub.f32 %v369, %v370
        %v372 = vand.u32 %v371, 4294901760
        %373 = vmatpush1.msra.mxu0 %v372
        %374 = vmatprep.subr.mxu0 0.0
        %375 = vmatpush2.msra.mxu0 0.0
        %376 = vmatprep.subr.mxu0 0.0
        %377 = vmatpush2.msra.mxu0 0.0
        %378 = vmatprep.subr.mxu0 0.0
        %379 = vmatpush2.msra.mxu0 0.0
        %380 = vmatprep.subr.mxu0 0.0
        %381 = vmatpush2.msra.mxu0 0.0
        %382 = vmatprep.subr.mxu0 0.0
        %383 = vmatpush2.msra.mxu0 0.0
        %384 = vmatprep.subr.mxu0 0.0
        %385 = vmatpush2.msra.mxu0 0.0
        %386 = vmatprep.subr.mxu0 0.0
        %387 = vmatpush2.msra.mxu0 0.0
        %388 = vmatprep.subr.mxu0 0.0
        %389 = vmatpush2.msra.mxu0 0.0
        %390 = vmatprep.subr.mxu0 0.0
        %391 = vmatpush2.msra.mxu0 0.0
        %392 = vmatprep.subr.mxu0 0.0
        %393 = vmatpush2.msra.mxu0 0.0
        %394 = vmatprep.subr.mxu0 0.0
        %395 = vmatpush2.msra.mxu0 0.0
        %396 = vmatprep.subr.mxu0 0.0
        %397 = vmatpush2.msra.mxu0 0.0
        %398 = vmatprep.subr.mxu0 0.0
        %399 = vmatpush2.msra.mxu0 0.0
        %400 = vmatprep.subr.mxu0 0.0
        %401 = vmatpush2.msra.mxu0 0.0
        %402 = vmatprep.subr.mxu0 0.0
        %403 = vmatpush2.msra.mxu0 0.0
        %404 = vmatprep.subr.mxu0 0.0
        %405 = vmatpush2.msra.mxu0 0.0
        %406 = vmatprep.mubr.f32.mxu0 0.0
        %v407 = vand.u32 %v154, 4294901760
        %408 = vmatmul.mubr.f32.gmra.mxu0 %v407
        %v409 = vpop.f32.mrf.mxu0
        %v410 = vadd.f32 %v259, %v409
        %v411 = vpop.f32.mrf.mxu0
        %412 = vdwg.mxu0
        %413 = vmatprep.subr.mxu0 0.0
        %v414 = vand.u32 %v170, 4294901760
        %v415 = vsub.f32 %v170, %v414
        %416 = vmatpush1.msra.mxu0 %v415
        %417 = vmatprep.subr.mxu0 0.0
        %v418 = vand.u32 %v169, 4294901760
        %v419 = vsub.f32 %v169, %v418
        %420 = vmatpush1.msra.mxu0 %v419
        %421 = vmatprep.subr.mxu0 0.0
        %v422 = vand.u32 %v168, 4294901760
        %v423 = vsub.f32 %v168, %v422
        %424 = vmatpush1.msra.mxu0 %v423
        %425 = vmatprep.subr.mxu0 0.0
        %v426 = vand.u32 %v167, 4294901760
        %v427 = vsub.f32 %v167, %v426
        %428 = vmatpush1.msra.mxu0 %v427
        %429 = vmatprep.subr.mxu0 0.0
        %v430 = vand.u32 %v166, 4294901760
        %v431 = vsub.f32 %v166, %v430
        %432 = vmatpush1.msra.mxu0 %v431
        %433 = vmatprep.subr.mxu0 0.0
        %v434 = vand.u32 %v165, 4294901760
        %v435 = vsub.f32 %v165, %v434
        %436 = vmatpush1.msra.mxu0 %v435
        %437 = vmatprep.subr.mxu0 0.0
        %v438 = vand.u32 %v164, 4294901760
        %v439 = vsub.f32 %v164, %v438
        %440 = vmatpush1.msra.mxu0 %v439
        %441 = vmatprep.subr.mxu0 0.0
        %v442 = vand.u32 %v163, 4294901760
        %v443 = vsub.f32 %v163, %v442
        %444 = vmatpush1.msra.mxu0 %v443
        %445 = vmatprep.subr.mxu0 0.0
        %v446 = vand.u32 %v162, 4294901760
        %v447 = vsub.f32 %v162, %v446
        %448 = vmatpush1.msra.mxu0 %v447
        %449 = vmatprep.subr.mxu0 0.0
        %v450 = vand.u32 %v161, 4294901760
        %v451 = vsub.f32 %v161, %v450
        %452 = vmatpush1.msra.mxu0 %v451
        %453 = vmatprep.subr.mxu0 0.0
        %v454 = vand.u32 %v160, 4294901760
        %v455 = vsub.f32 %v160, %v454
        %456 = vmatpush1.msra.mxu0 %v455
        %457 = vmatprep.subr.mxu0 0.0
        %v458 = vand.u32 %v159, 4294901760
        %v459 = vsub.f32 %v159, %v458
        %460 = vmatpush1.msra.mxu0 %v459
        %461 = vmatprep.subr.mxu0 0.0
        %v462 = vand.u32 %v158, 4294901760
        %v463 = vsub.f32 %v158, %v462
        %464 = vmatpush1.msra.mxu0 %v463
        %465 = vmatprep.subr.mxu0 0.0
        %v466 = vand.u32 %v157, 4294901760
        %v467 = vsub.f32 %v157, %v466
        %468 = vmatpush1.msra.mxu0 %v467
        %469 = vmatprep.subr.mxu0 0.0
        %v470 = vand.u32 %v156, 4294901760
        %v471 = vsub.f32 %v156, %v470
        %472 = vmatpush1.msra.mxu0 %v471
        %473 = vmatprep.subr.mxu0 0.0
        %v474 = vand.u32 %v155, 4294901760
        %v475 = vsub.f32 %v155, %v474
        %476 = vmatpush1.msra.mxu0 %v475
        %477 = vmatprep.subr.mxu0 0.0
        %478 = vmatpush2.msra.mxu0 0.0
        %479 = vmatprep.subr.mxu0 0.0
        %480 = vmatpush2.msra.mxu0 0.0
        %481 = vmatprep.subr.mxu0 0.0
        %482 = vmatpush2.msra.mxu0 0.0
        %483 = vmatprep.subr.mxu0 0.0
        %484 = vmatpush2.msra.mxu0 0.0
        %485 = vmatprep.subr.mxu0 0.0
        %486 = vmatpush2.msra.mxu0 0.0
        %487 = vmatprep.subr.mxu0 0.0
        %488 = vmatpush2.msra.mxu0 0.0
        %489 = vmatprep.subr.mxu0 0.0
        %490 = vmatpush2.msra.mxu0 0.0
        %491 = vmatprep.subr.mxu0 0.0
        %492 = vmatpush2.msra.mxu0 0.0
        %493 = vmatprep.subr.mxu0 0.0
        %494 = vmatpush2.msra.mxu0 0.0
        %495 = vmatprep.subr.mxu0 0.0
        %496 = vmatpush2.msra.mxu0 0.0
        %497 = vmatprep.subr.mxu0 0.0
        %498 = vmatpush2.msra.mxu0 0.0
        %499 = vmatprep.subr.mxu0 0.0
        %500 = vmatpush2.msra.mxu0 0.0
        %501 = vmatprep.subr.mxu0 0.0
        %502 = vmatpush2.msra.mxu0 0.0
        %503 = vmatprep.subr.mxu0 0.0
        %504 = vmatpush2.msra.mxu0 0.0
        %505 = vmatprep.subr.mxu0 0.0
        %506 = vmatpush2.msra.mxu0 0.0
        %507 = vmatprep.subr.mxu0 0.0
        %508 = vmatpush2.msra.mxu0 0.0
        %509 = vmatprep.mubr.f32.mxu0 0.0
        %v510 = vand.u32 %v154, 4294901760
        %v511 = vsub.f32 %v154, %v510
        %512 = vmatmul.mubr.f32.gmra.mxu0 %v511
        %v513 = vpop.f32.mrf.mxu0
        %v514 = vadd.f32 %v410, %v513
        %v515 = vpop.f32.mrf.mxu0
        %516 = vdwg.mxu0
        %517 = vmatprep.subr.mxu0 0.0
        %v518 = vand.u32 %v170, 4294901760
        %519 = vmatpush1.msra.mxu0 %v518
        %520 = vmatprep.subr.mxu0 0.0
        %v521 = vand.u32 %v169, 4294901760
        %522 = vmatpush1.msra.mxu0 %v521
        %523 = vmatprep.subr.mxu0 0.0
        %v524 = vand.u32 %v168, 4294901760
        %525 = vmatpush1.msra.mxu0 %v524
        %526 = vmatprep.subr.mxu0 0.0
        %v527 = vand.u32 %v167, 4294901760
        %528 = vmatpush1.msra.mxu0 %v527
        %529 = vmatprep.subr.mxu0 0.0
        %v530 = vand.u32 %v166, 4294901760
        %531 = vmatpush1.msra.mxu0 %v530
        %532 = vmatprep.subr.mxu0 0.0
        %v533 = vand.u32 %v165, 4294901760
        %534 = vmatpush1.msra.mxu0 %v533
        %535 = vmatprep.subr.mxu0 0.0
        %v536 = vand.u32 %v164, 4294901760
        %537 = vmatpush1.msra.mxu0 %v536
        %538 = vmatprep.subr.mxu0 0.0
        %v539 = vand.u32 %v163, 4294901760
        %540 = vmatpush1.msra.mxu0 %v539
        %541 = vmatprep.subr.mxu0 0.0
        %v542 = vand.u32 %v162, 4294901760
        %543 = vmatpush1.msra.mxu0 %v542
        %544 = vmatprep.subr.mxu0 0.0
        %v545 = vand.u32 %v161, 4294901760
        %546 = vmatpush1.msra.mxu0 %v545
        %547 = vmatprep.subr.mxu0 0.0
        %v548 = vand.u32 %v160, 4294901760
        %549 = vmatpush1.msra.mxu0 %v548
        %550 = vmatprep.subr.mxu0 0.0
        %v551 = vand.u32 %v159, 4294901760
        %552 = vmatpush1.msra.mxu0 %v551
        %553 = vmatprep.subr.mxu0 0.0
        %v554 = vand.u32 %v158, 4294901760
        %555 = vmatpush1.msra.mxu0 %v554
        %556 = vmatprep.subr.mxu0 0.0
        %v557 = vand.u32 %v157, 4294901760
        %558 = vmatpush1.msra.mxu0 %v557
        %559 = vmatprep.subr.mxu0 0.0
        %v560 = vand.u32 %v156, 4294901760
        %561 = vmatpush1.msra.mxu0 %v560
        %562 = vmatprep.subr.mxu0 0.0
        %v563 = vand.u32 %v155, 4294901760
        %564 = vmatpush1.msra.mxu0 %v563
        %565 = vmatprep.subr.mxu0 0.0
        %566 = vmatpush2.msra.mxu0 0.0
        %567 = vmatprep.subr.mxu0 0.0
        %568 = vmatpush2.msra.mxu0 0.0
        %569 = vmatprep.subr.mxu0 0.0
        %570 = vmatpush2.msra.mxu0 0.0
        %571 = vmatprep.subr.mxu0 0.0
        %572 = vmatpush2.msra.mxu0 0.0
        %573 = vmatprep.subr.mxu0 0.0
        %574 = vmatpush2.msra.mxu0 0.0
        %575 = vmatprep.subr.mxu0 0.0
        %576 = vmatpush2.msra.mxu0 0.0
        %577 = vmatprep.subr.mxu0 0.0
        %578 = vmatpush2.msra.mxu0 0.0
        %579 = vmatprep.subr.mxu0 0.0
        %580 = vmatpush2.msra.mxu0 0.0
        %581 = vmatprep.subr.mxu0 0.0
        %582 = vmatpush2.msra.mxu0 0.0
        %583 = vmatprep.subr.mxu0 0.0
        %584 = vmatpush2.msra.mxu0 0.0
        %585 = vmatprep.subr.mxu0 0.0
        %586 = vmatpush2.msra.mxu0 0.0
        %587 = vmatprep.subr.mxu0 0.0
        %588 = vmatpush2.msra.mxu0 0.0
        %589 = vmatprep.subr.mxu0 0.0
        %590 = vmatpush2.msra.mxu0 0.0
        %591 = vmatprep.subr.mxu0 0.0
        %592 = vmatpush2.msra.mxu0 0.0
        %593 = vmatprep.subr.mxu0 0.0
        %594 = vmatpush2.msra.mxu0 0.0
        %595 = vmatprep.subr.mxu0 0.0
        %596 = vmatpush2.msra.mxu0 0.0
        %597 = vmatprep.mubr.f32.mxu0 0.0
        %v598 = vand.u32 %v154, 4294901760
        %v599 = vsub.f32 %v154, %v598
        %v600 = vand.u32 %v599, 4294901760
        %601 = vmatmul.mubr.f32.gmra.mxu0 %v600
        %v602 = vpop.f32.mrf.mxu0
        %v603 = vadd.f32 %v514, %v602
        %v604 = vpop.f32.mrf.mxu0
        %605 = vdwg.mxu0
        %606 = vmatprep.subr.mxu0 0.0
        %v607 = vand.u32 %v170, 4294901760
        %v608 = vsub.f32 %v170, %v607
        %v609 = vand.u32 %v608, 4294901760
        %610 = vmatpush1.msra.mxu0 %v609
        %611 = vmatprep.subr.mxu0 0.0
        %v612 = vand.u32 %v169, 4294901760
        %v613 = vsub.f32 %v169, %v612
        %v614 = vand.u32 %v613, 4294901760
        %615 = vmatpush1.msra.mxu0 %v614
        %616 = vmatprep.subr.mxu0 0.0
        %v617 = vand.u32 %v168, 4294901760
        %v618 = vsub.f32 %v168, %v617
        %v619 = vand.u32 %v618, 4294901760
        %620 = vmatpush1.msra.mxu0 %v619
        %621 = vmatprep.subr.mxu0 0.0
        %v622 = vand.u32 %v167, 4294901760
        %v623 = vsub.f32 %v167, %v622
        %v624 = vand.u32 %v623, 4294901760
        %625 = vmatpush1.msra.mxu0 %v624
        %626 = vmatprep.subr.mxu0 0.0
        %v627 = vand.u32 %v166, 4294901760
        %v628 = vsub.f32 %v166, %v627
        %v629 = vand.u32 %v628, 4294901760
        %630 = vmatpush1.msra.mxu0 %v629
        %631 = vmatprep.subr.mxu0 0.0
        %v632 = vand.u32 %v165, 4294901760
        %v633 = vsub.f32 %v165, %v632
        %v634 = vand.u32 %v633, 4294901760
        %635 = vmatpush1.msra.mxu0 %v634
        %636 = vmatprep.subr.mxu0 0.0
        %v637 = vand.u32 %v164, 4294901760
        %v638 = vsub.f32 %v164, %v637
        %v639 = vand.u32 %v638, 4294901760
        %640 = vmatpush1.msra.mxu0 %v639
        %641 = vmatprep.subr.mxu0 0.0
        %v642 = vand.u32 %v163, 4294901760
        %v643 = vsub.f32 %v163, %v642
        %v644 = vand.u32 %v643, 4294901760
        %645 = vmatpush1.msra.mxu0 %v644
        %646 = vmatprep.subr.mxu0 0.0
        %v647 = vand.u32 %v162, 4294901760
        %v648 = vsub.f32 %v162, %v647
        %v649 = vand.u32 %v648, 4294901760
        %650 = vmatpush1.msra.mxu0 %v649
        %651 = vmatprep.subr.mxu0 0.0
        %v652 = vand.u32 %v161, 4294901760
        %v653 = vsub.f32 %v161, %v652
        %v654 = vand.u32 %v653, 4294901760
        %655 = vmatpush1.msra.mxu0 %v654
        %656 = vmatprep.subr.mxu0 0.0
        %v657 = vand.u32 %v160, 4294901760
        %v658 = vsub.f32 %v160, %v657
        %v659 = vand.u32 %v658, 4294901760
        %660 = vmatpush1.msra.mxu0 %v659
        %661 = vmatprep.subr.mxu0 0.0
        %v662 = vand.u32 %v159, 4294901760
        %v663 = vsub.f32 %v159, %v662
        %v664 = vand.u32 %v663, 4294901760
        %665 = vmatpush1.msra.mxu0 %v664
        %666 = vmatprep.subr.mxu0 0.0
        %v667 = vand.u32 %v158, 4294901760
        %v668 = vsub.f32 %v158, %v667
        %v669 = vand.u32 %v668, 4294901760
        %670 = vmatpush1.msra.mxu0 %v669
        %671 = vmatprep.subr.mxu0 0.0
        %v672 = vand.u32 %v157, 4294901760
        %v673 = vsub.f32 %v157, %v672
        %v674 = vand.u32 %v673, 4294901760
        %675 = vmatpush1.msra.mxu0 %v674
        %676 = vmatprep.subr.mxu0 0.0
        %v677 = vand.u32 %v156, 4294901760
        %v678 = vsub.f32 %v156, %v677
        %v679 = vand.u32 %v678, 4294901760
        %680 = vmatpush1.msra.mxu0 %v679
        %681 = vmatprep.subr.mxu0 0.0
        %v682 = vand.u32 %v155, 4294901760
        %v683 = vsub.f32 %v155, %v682
        %v684 = vand.u32 %v683, 4294901760
        %685 = vmatpush1.msra.mxu0 %v684
        %686 = vmatprep.subr.mxu0 0.0
        %687 = vmatpush2.msra.mxu0 0.0
        %688 = vmatprep.subr.mxu0 0.0
        %689 = vmatpush2.msra.mxu0 0.0
        %690 = vmatprep.subr.mxu0 0.0
        %691 = vmatpush2.msra.mxu0 0.0
        %692 = vmatprep.subr.mxu0 0.0
        %693 = vmatpush2.msra.mxu0 0.0
        %694 = vmatprep.subr.mxu0 0.0
        %695 = vmatpush2.msra.mxu0 0.0
        %696 = vmatprep.subr.mxu0 0.0
        %697 = vmatpush2.msra.mxu0 0.0
        %698 = vmatprep.subr.mxu0 0.0
        %699 = vmatpush2.msra.mxu0 0.0
        %700 = vmatprep.subr.mxu0 0.0
        %701 = vmatpush2.msra.mxu0 0.0
        %702 = vmatprep.subr.mxu0 0.0
        %703 = vmatpush2.msra.mxu0 0.0
        %704 = vmatprep.subr.mxu0 0.0
        %705 = vmatpush2.msra.mxu0 0.0
        %706 = vmatprep.subr.mxu0 0.0
        %707 = vmatpush2.msra.mxu0 0.0
        %708 = vmatprep.subr.mxu0 0.0
        %709 = vmatpush2.msra.mxu0 0.0
        %710 = vmatprep.subr.mxu0 0.0
        %711 = vmatpush2.msra.mxu0 0.0
        %712 = vmatprep.subr.mxu0 0.0
        %713 = vmatpush2.msra.mxu0 0.0
        %714 = vmatprep.subr.mxu0 0.0
        %715 = vmatpush2.msra.mxu0 0.0
        %716 = vmatprep.subr.mxu0 0.0
        %717 = vmatpush2.msra.mxu0 0.0
        %718 = vmatprep.mubr.f32.mxu0 0.0
        %v719 = vand.u32 %v154, 4294901760
        %720 = vmatmul.mubr.f32.gmra.mxu0 %v719
        %v721 = vpop.f32.mrf.mxu0
        %v722 = vadd.f32 %v603, %v721
        %v723 = vpop.f32.mrf.mxu0
        %724 = vdwg.mxu0
        %725 = vmatprep.subr.mxu0 0.0
        %v726 = vand.u32 %v170, 4294901760
        %727 = vmatpush1.msra.mxu0 %v726
        %728 = vmatprep.subr.mxu0 0.0
        %v729 = vand.u32 %v169, 4294901760
        %730 = vmatpush1.msra.mxu0 %v729
        %731 = vmatprep.subr.mxu0 0.0
        %v732 = vand.u32 %v168, 4294901760
        %733 = vmatpush1.msra.mxu0 %v732
        %734 = vmatprep.subr.mxu0 0.0
        %v735 = vand.u32 %v167, 4294901760
        %736 = vmatpush1.msra.mxu0 %v735
        %737 = vmatprep.subr.mxu0 0.0
        %v738 = vand.u32 %v166, 4294901760
        %739 = vmatpush1.msra.mxu0 %v738
        %740 = vmatprep.subr.mxu0 0.0
        %v741 = vand.u32 %v165, 4294901760
        %742 = vmatpush1.msra.mxu0 %v741
        %743 = vmatprep.subr.mxu0 0.0
        %v744 = vand.u32 %v164, 4294901760
        %745 = vmatpush1.msra.mxu0 %v744
        %746 = vmatprep.subr.mxu0 0.0
        %v747 = vand.u32 %v163, 4294901760
        %748 = vmatpush1.msra.mxu0 %v747
        %749 = vmatprep.subr.mxu0 0.0
        %v750 = vand.u32 %v162, 4294901760
        %751 = vmatpush1.msra.mxu0 %v750
        %752 = vmatprep.subr.mxu0 0.0
        %v753 = vand.u32 %v161, 4294901760
        %754 = vmatpush1.msra.mxu0 %v753
        %755 = vmatprep.subr.mxu0 0.0
        %v756 = vand.u32 %v160, 4294901760
        %757 = vmatpush1.msra.mxu0 %v756
        %758 = vmatprep.subr.mxu0 0.0
        %v759 = vand.u32 %v159, 4294901760
        %760 = vmatpush1.msra.mxu0 %v759
        %761 = vmatprep.subr.mxu0 0.0
        %v762 = vand.u32 %v158, 4294901760
        %763 = vmatpush1.msra.mxu0 %v762
        %764 = vmatprep.subr.mxu0 0.0
        %v765 = vand.u32 %v157, 4294901760
        %766 = vmatpush1.msra.mxu0 %v765
        %767 = vmatprep.subr.mxu0 0.0
        %v768 = vand.u32 %v156, 4294901760
        %769 = vmatpush1.msra.mxu0 %v768
        %770 = vmatprep.subr.mxu0 0.0
        %v771 = vand.u32 %v155, 4294901760
        %772 = vmatpush1.msra.mxu0 %v771
        %773 = vmatprep.subr.mxu0 0.0
        %774 = vmatpush2.msra.mxu0 0.0
        %775 = vmatprep.subr.mxu0 0.0
        %776 = vmatpush2.msra.mxu0 0.0
        %777 = vmatprep.subr.mxu0 0.0
        %778 = vmatpush2.msra.mxu0 0.0
        %779 = vmatprep.subr.mxu0 0.0
        %780 = vmatpush2.msra.mxu0 0.0
        %781 = vmatprep.subr.mxu0 0.0
        %782 = vmatpush2.msra.mxu0 0.0
        %783 = vmatprep.subr.mxu0 0.0
        %784 = vmatpush2.msra.mxu0 0.0
        %785 = vmatprep.subr.mxu0 0.0
        %786 = vmatpush2.msra.mxu0 0.0
        %787 = vmatprep.subr.mxu0 0.0
        %788 = vmatpush2.msra.mxu0 0.0
        %789 = vmatprep.subr.mxu0 0.0
        %790 = vmatpush2.msra.mxu0 0.0
        %791 = vmatprep.subr.mxu0 0.0
        %792 = vmatpush2.msra.mxu0 0.0
        %793 = vmatprep.subr.mxu0 0.0
        %794 = vmatpush2.msra.mxu0 0.0
        %795 = vmatprep.subr.mxu0 0.0
        %796 = vmatpush2.msra.mxu0 0.0
        %797 = vmatprep.subr.mxu0 0.0
        %798 = vmatpush2.msra.mxu0 0.0
        %799 = vmatprep.subr.mxu0 0.0
        %800 = vmatpush2.msra.mxu0 0.0
        %801 = vmatprep.subr.mxu0 0.0
        %802 = vmatpush2.msra.mxu0 0.0
        %803 = vmatprep.subr.mxu0 0.0
        %804 = vmatpush2.msra.mxu0 0.0
        %805 = vmatprep.mubr.f32.mxu0 0.0
        %v806 = vand.u32 %v154, 4294901760
        %807 = vmatmul.mubr.f32.gmra.mxu0 %v806
        %v808 = vpop.f32.mrf.mxu0
        %v809 = vadd.f32 %v722, %v808
        %v810 = vpop.f32.mrf.mxu0
        %811 = vdwg.mxu0
        %vm812 = vcmask 130048
        %813 = vst.msk [vmem:[%s134] sm:$0xff] %vm812, %v809
        %s814 = sand.u32 %s71, 1
        %s815 = scalar_lea.sflag [#allocation3], %s814
        %s816 = sand.u32 %s71, 1
        %s817 = smul.addr %s816, 8
        %s818 = scalar_lea.vmem [#allocation2], %s817
        // Predicated region
        $region29: #{tpu_custom_call.1} parent=27 // pred_check
          %p819 = pneg %p81
        $region30: #{tpu_custom_call.1} parent=27 // pred_check_branch
          %821 = sbr.rel (%p819) target = $region32
        $region31: #{tpu_custom_call.1} parent=27 // pred_region
          %s823 = ssub.s32 128, 128
          %824 = vsyncadd %s815, %s823
          %s825 = smul.addr %s16, 128
          %s826 = scalar_lea.hbm %s2, %s825
          %s828 = sshll.u32 %s818, 4
          %s829 = int_to_ptr.vmem [resolvable:$true] %s828
          %831 = dma.vmem_to_hbm [thread:$0]  %s829, 128, %s826, %s815
        $region32: #{tpu_custom_call.1} parent=27 // pred_fallthru
          _
      $region28: #{tpu_custom_call.1} parent=5 // pred_fallthru
        _
      %p832 = scmp.le.s32.totalorder 2, %s11
      // Predicated region
      $region33: #{tpu_custom_call.1} parent=5 // pred_check
        %p833 = pneg %p832
      $region34: #{tpu_custom_call.1} parent=5 // pred_check_branch
        %835 = sbr.rel (%p833) target = $region36
      $region35: #{tpu_custom_call.1} parent=5 // pred_region
        %s836 = ssub.s32 %s11, 2
        // Predicated region
        $region37: #{tpu_custom_call.1} parent=35 // pred_check
          %p837 = pneg %p87
        $region38: #{tpu_custom_call.1} parent=35 // pred_check_branch
          %839 = sbr.rel (%p837) target = $region40
        $region39: #{tpu_custom_call.1} parent=35 // pred_region
          %s840 = sand.u32 %s72, 1
          %s841 = scalar_lea.sflag [#allocation3], %s840
          %s842 = sand.u32 %s72, 1
          %s843 = smul.addr %s842, 8
          %s844 = scalar_lea.vmem [#allocation2], %s843
          %845 = dma.done %s841, 128
        $region40: #{tpu_custom_call.1} parent=35 // pred_fallthru
          _
      $region36: #{tpu_custom_call.1} parent=5 // pred_fallthru
        _
    $region6: #{tpu_custom_call.1} parent=1 // loop_footer
      %s15 = sadd.s32 1, %s11
    $region7: #{tpu_custom_call.1} parent=1 // loop_footer_branch
      %10 = sbr.rel target = $region3
    $region8: #{tpu_custom_call.1} parent=1 // loop_exit
      _
    %846 = vsyncpa [#allocation3], 1
    %s847 = scalar_lea.sflag [#allocation3], 1
    %848 = vsyncpa %s847, 1

</llo_original>
